<compile_context>
chip_gen: v5e
topology: v5e:2x2
jax: 0.10.0
libtpu: 0.0.40
codegen_flags: <defaults>
</compile_context>

<pallas_src>
import functools

import jax
import jax.numpy as jnp
from jax.experimental import pallas as pl
from jax.experimental.pallas import tpu as pltpu

# TODO(synk): PyTorch nn.LeakyReLU defaults to 0.01; this GAN-style AE family
# typically uses 0.2 -- verify against the reference autoencoder config.
NEG_SLOPE = 0.2


# -----------------------------------------------------------------------------
# Fused forward kernel: single grid step, everything resident in VMEM.
# -----------------------------------------------------------------------------
def _fused_forward_kernel(x_ref, body_ref, nf_ref, nl_ref,
                          me_w1_ref, me_b1_ref, me_w2_ref, me_b2_ref,
                          de_w1m_ref, de_w1b_ref, de_b1_ref,
                          de_w2_ref, de_b2_ref, o_ref):
    """x_ref:    (R, Cin) f32, R = 2*B*T (two streams folded into rows)
    body_ref: (R, body_dim) f32  (body codes pre-broadcast over T)
    nf_ref/nl_ref: (R, 1) f32 "keep" masks (0.0 at t==0 / t==T-1, else 1.0)
    *_w*_ref: (3, Cin, Cout) bf16 conv weights (tap 0/1/2), biases (1, Cout) f32
    o_ref:    (Cpad, R) f32 — transposed, channel-padded output."""
    nf = nf_ref[...]                      # (R, 1) f32
    nl = nl_ref[...]                      # (R, 1) f32

    def tap(v, w):                        # MXU matmul, f32 accumulate
        return jnp.dot(v.astype(jnp.bfloat16), w,
                       preferred_element_type=jnp.float32)

    def conv3(v, w_ref):
        # Conv1d(k=3, s=1, p=1) over time, batch+stream folded into rows.
        # 'same' zero padding at each batch element's time boundaries (and the
        # jnp.roll wrap-around rows) is killed by the (R,1) keep masks.
        v_prev = jnp.roll(v, 1, axis=0) * nf       # f32 (VPU), roll on XLU
        v_next = jnp.roll(v, -1, axis=0) * nl
        return tap(v_prev, w_ref[0]) + tap(v, w_ref[1]) + tap(v_next, w_ref[2])

    def leaky(y):                         # LeakyReLU in f32 (v5e-safe)
        return jnp.where(y > 0, y, NEG_SLOPE * y)

    x = x_ref[...]                                                # (R, Cin)

    # --- motion encoder (conv -> LeakyReLU -> conv), all in VMEM ------------
    h1 = leaky(conv3(x, me_w1_ref) + me_b1_ref[...])              # (R, H)
    motion = conv3(h1, me_w2_ref) + me_b2_ref[...]                # (R, M)

    # --- decoder layer 1: motion conv + body contribution (no lane concat) --
    # body is constant over T within a batch element, so its prev/next taps are
    # just the boundary masks applied to the same rows.
    body = body_ref[...]                                          # (R, bd)
    body_term = (tap(body * nf, de_w1b_ref[0])
                 + tap(body, de_w1b_ref[1])
                 + tap(body * nl, de_w1b_ref[2]))                 # (R, H)
    h2 = leaky(conv3(motion, de_w1m_ref) + body_term + de_b1_ref[...])

    # --- decoder layer 2, channel-padded; store transposed (lane dim = rows) -
    out = conv3(h2, de_w2_ref) + de_b2_ref[...]                   # (R, Cpad)
    o_ref[...] = jnp.transpose(out).astype(o_ref.dtype)           # (Cpad, R)


# -----------------------------------------------------------------------------
# One-time (outside jit) parameter preprocessing
# -----------------------------------------------------------------------------
def prepare_params(params):
    """bf16-cast conv weights (kept as (3, Cin, Cout) tap stacks), split de_w1
    into motion/body row blocks, pad the output layer to a multiple of 8
    channels, reshape biases to (1, Cout) f32."""
    c_out = params["de_w2"].shape[-1]
    motion_dim = params["me_w2"].shape[-1]
    out_pad = ((c_out + 7) // 8) * 8

    bf = lambda w: w.astype(jnp.bfloat16)
    de_w2_pad = jnp.pad(params["de_w2"], ((0, 0), (0, 0), (0, out_pad - c_out)))
    de_b2_pad = jnp.pad(params["de_b2"], (0, out_pad - c_out))

    return {
        "me_w1": bf(params["me_w1"]),
        "me_b1": params["me_b1"].reshape(1, -1).astype(jnp.float32),
        "me_w2": bf(params["me_w2"]),
        "me_b2": params["me_b2"].reshape(1, -1).astype(jnp.float32),
        "de_w1m": bf(params["de_w1"][:, :motion_dim, :]),
        "de_w1b": bf(params["de_w1"][:, motion_dim:, :]),
        "de_b1": params["de_b1"].reshape(1, -1).astype(jnp.float32),
        "de_w2": bf(de_w2_pad),
        "de_b2": de_b2_pad.reshape(1, -1).astype(jnp.float32),
    }


# -----------------------------------------------------------------------------
# Wrapper (jit this)
# -----------------------------------------------------------------------------
def base_trainer_forward(prepped, x_a, x_v, key):
    """x_a, x_v: (B, C, T) NCT (PyTorch layout). Returns (x_ab, x_ba) in NCT."""
    B, C, T = x_a.shape
    body_dim = prepped["de_w1b"].shape[1]
    out_pad = prepped["de_w2"].shape[-1]
    BT = B * T
    R = 2 * BT

    # sample_body_code
    key_a, key_b = jax.random.split(key)
    body_a = jax.random.normal(key_a, (B, body_dim), dtype=jnp.float32)
    body_b = jax.random.normal(key_b, (B, body_dim), dtype=jnp.float32)

    # NCT -> NTC, fold batch AND the two streams into rows:
    #   rows [0,   BT): (x_a, body_b) -> x_ab
    #   rows [BT, 2BT): (x_v, body_a) -> x_ba
    xa = jnp.transpose(x_a, (0, 2, 1)).reshape(BT, C)
    xv = jnp.transpose(x_v, (0, 2, 1)).reshape(BT, C)
    x_all = jnp.concatenate([xa, xv], axis=0)                     # (R, C)

    def rep(body):  # broadcast (B, bd) over T -> (BT, bd)
        return jnp.broadcast_to(body[:, None, :], (B, T, body_dim)).reshape(BT, body_dim)
    body_rows = jnp.concatenate([rep(body_b), rep(body_a)], axis=0)  # (R, bd)

    # Batch-boundary "keep" masks, computed once here (not per conv in-kernel).
    t_idx = jnp.arange(R, dtype=jnp.int32) % T
    nf = (t_idx != 0).astype(jnp.float32).reshape(R, 1)            # kill prev tap
    nl = (t_idx != T - 1).astype(jnp.float32).reshape(R, 1)        # kill next tap

    vmem = pl.BlockSpec(memory_space=pltpu.MemorySpace.VMEM)
    out_t = pl.pallas_call(
        _fused_forward_kernel,
        out_shape=jax.ShapeDtypeStruct((out_pad, R), jnp.float32),
        in_specs=[vmem] * 13,
        out_specs=vmem,
    )(x_all, body_rows, nf, nl,
      prepped["me_w1"], prepped["me_b1"], prepped["me_w2"], prepped["me_b2"],
      prepped["de_w1m"], prepped["de_w1b"], prepped["de_b1"],
      prepped["de_w2"], prepped["de_b2"])

    # (Cpad, R) -> two NCT outputs (tiny XLA reshapes/transposes).
    x_ab = out_t[:C, :BT].reshape(C, B, T).transpose(1, 0, 2)
    x_ba = out_t[:C, BT:].reshape(C, B, T).transpose(1, 0, 2)
    return x_ab, x_ba


# -----------------------------------------------------------------------------
# Deterministic parameter init (gaussian 0.02, zero bias — mirrors weights_init)
# -----------------------------------------------------------------------------
def init_params(key, c_in, hidden, motion_dim, body_dim):
    def w(k, shape):
        return 0.02 * jax.random.normal(k, shape, dtype=jnp.float32)

    ks = jax.random.split(key, 8)
    return {
        # motion encoder
        "me_w1": w(ks[0], (3, c_in, hidden)),       "me_b1": jnp.zeros((hidden,), jnp.float32),
        "me_w2": w(ks[1], (3, hidden, motion_dim)), "me_b2": jnp.zeros((motion_dim,), jnp.float32),
        # body encoder (present in the module; its forward outputs are unused
        # in BaseTrainer.forward and therefore not computed — XLA would DCE them)
        "be_w1": w(ks[2], (3, c_in, hidden)),       "be_b1": jnp.zeros((hidden,), jnp.float32),
        "be_w2": w(ks[3], (3, hidden, body_dim)),   "be_b2": jnp.zeros((body_dim,), jnp.float32),
        # decoder (input channels = motion ++ body, matching the reference concat order)
        "de_w1": w(ks[4], (3, motion_dim + body_dim, hidden)), "de_b1": jnp.zeros((hidden,), jnp.float32),
        "de_w2": w(ks[5], (3, hidden, c_in)),                  "de_b2": jnp.zeros((c_in,), jnp.float32),
    }


if __name__ == "__main__":
    # TODO(synk): optimizers / schedulers / checkpoint IO / discriminator / fc
    # head / evaluate()/accuracy() from the module have no kernel equivalent
    # (forward-pass only).
    # TODO(synk): encode_body(x_a)/encode_body(x_v) outputs are discarded by the
    # reference forward; they are omitted here (XLA would DCE them anyway).
    B, C, T = 2, 4, 16
    HIDDEN, MOTION_DIM, BODY_DIM = 64, 32, 16

    root = jax.random.PRNGKey(0)
    k_par, k_xa, k_xv, k_body = jax.random.split(root, 4)
    params = init_params(k_par, C, HIDDEN, MOTION_DIM, BODY_DIM)

    # Weight preprocessing happens ONCE, outside the jitted forward.
    prepped = prepare_params(params)

    x_a = jax.random.normal(k_xa, (B, C, T), dtype=jnp.float32)  # NCT like torch
    x_v = jax.random.normal(k_xv, (B, C, T), dtype=jnp.float32)

    fwd = jax.jit(base_trainer_forward)
    x_ab, x_ba = fwd(prepped, x_a, x_v, k_body)
    jax.block_until_ready((x_ab, x_ba))

    assert x_ab.shape == (B, C, T) and x_ba.shape == (B, C, T)
    assert bool(jnp.all(jnp.isfinite(x_ab))) and bool(jnp.all(jnp.isfinite(x_ba)))
    print("KERNEL_OK")
</pallas_src>

<mosaic_0001>
module attributes {stable_mosaic.version = 11 : i64} {
  func.func @_fused_forward_kernel(%arg0: memref<64x4xf32, #tpu.memory_space<vmem>>, %arg1: memref<64x16xf32, #tpu.memory_space<vmem>>, %arg2: memref<64x1xf32, #tpu.memory_space<vmem>>, %arg3: memref<64x1xf32, #tpu.memory_space<vmem>>, %arg4: memref<3x4x64xbf16, #tpu.memory_space<vmem>>, %arg5: memref<1x64xf32, #tpu.memory_space<vmem>>, %arg6: memref<3x64x32xbf16, #tpu.memory_space<vmem>>, %arg7: memref<1x32xf32, #tpu.memory_space<vmem>>, %arg8: memref<3x32x64xbf16, #tpu.memory_space<vmem>>, %arg9: memref<3x16x64xbf16, #tpu.memory_space<vmem>>, %arg10: memref<1x64xf32, #tpu.memory_space<vmem>>, %arg11: memref<3x64x8xbf16, #tpu.memory_space<vmem>>, %arg12: memref<1x8xf32, #tpu.memory_space<vmem>>, %arg13: memref<8x64xf32, #tpu.memory_space<vmem>>) attributes {dimension_semantics = [], scalar_prefetch = 0 : i64, scratch_operands = 0 : i64, tpu.core_type = #tpu.core_type<tc>} {
    %c0 = arith.constant 0 : index
    %c0_0 = arith.constant 0 : index
    %0 = vector.load %arg2[%c0, %c0_0] : memref<64x1xf32, #tpu.memory_space<vmem>>, vector<64x1xf32>
    %c0_1 = arith.constant 0 : index
    %c0_2 = arith.constant 0 : index
    %1 = vector.load %arg3[%c0_1, %c0_2] : memref<64x1xf32, #tpu.memory_space<vmem>>, vector<64x1xf32>
    %c0_3 = arith.constant 0 : index
    %c0_4 = arith.constant 0 : index
    %2 = vector.load %arg0[%c0_3, %c0_4] : memref<64x4xf32, #tpu.memory_space<vmem>>, vector<64x4xf32>
    %3 = vector.extract_strided_slice %2 {offsets = [63, 0], sizes = [1, 4], strides = [1, 1]} : vector<64x4xf32> to vector<1x4xf32>
    %4 = vector.extract_strided_slice %2 {offsets = [0, 0], sizes = [63, 4], strides = [1, 1]} : vector<64x4xf32> to vector<63x4xf32>
    %5 = tpu.concatenate %3, %4 in 0 : vector<1x4xf32>, vector<63x4xf32> -> vector<64x4xf32>
    %6 = vector.broadcast %0 : vector<64x1xf32> to vector<64x4xf32>
    %7 = arith.mulf %5, %6 : vector<64x4xf32>
    %8 = vector.extract_strided_slice %2 {offsets = [1, 0], sizes = [63, 4], strides = [1, 1]} : vector<64x4xf32> to vector<63x4xf32>
    %9 = vector.extract_strided_slice %2 {offsets = [0, 0], sizes = [1, 4], strides = [1, 1]} : vector<64x4xf32> to vector<1x4xf32>
    %10 = tpu.concatenate %8, %9 in 0 : vector<63x4xf32>, vector<1x4xf32> -> vector<64x4xf32>
    %11 = vector.broadcast %1 : vector<64x1xf32> to vector<64x4xf32>
    %12 = arith.mulf %10, %11 : vector<64x4xf32>
    %c0_5 = arith.constant 0 : index
    %c0_6 = arith.constant 0 : index
    %c0_7 = arith.constant 0 : index
    %13 = vector.load %arg4[%c0_5, %c0_6, %c0_7] : memref<3x4x64xbf16, #tpu.memory_space<vmem>>, vector<1x4x64xbf16>
    %14 = vector.shape_cast %13 : vector<1x4x64xbf16> to vector<4x64xbf16>
    %15 = arith.truncf %7 : vector<64x4xf32> to vector<64x4xbf16>
    %cst = arith.constant dense<0.000000e+00> : vector<64x64xf32>
    %16 = tpu.matmul %15, %14, %cst {dimension_numbers = #tpu.dot_dimension_numbers<[1], [0], [0], [1], [0, 0, 1, 1], [], []>} : vector<64x4xbf16>, vector<4x64xbf16>, vector<64x64xf32> -> vector<64x64xf32>
    %c1 = arith.constant 1 : index
    %c0_8 = arith.constant 0 : index
    %c0_9 = arith.constant 0 : index
    %17 = vector.load %arg4[%c1, %c0_8, %c0_9] : memref<3x4x64xbf16, #tpu.memory_space<vmem>>, vector<1x4x64xbf16>
    %18 = vector.shape_cast %17 : vector<1x4x64xbf16> to vector<4x64xbf16>
    %19 = arith.truncf %2 : vector<64x4xf32> to vector<64x4xbf16>
    %cst_10 = arith.constant dense<0.000000e+00> : vector<64x64xf32>
    %20 = tpu.matmul %19, %18, %cst_10 {dimension_numbers = #tpu.dot_dimension_numbers<[1], [0], [0], [1], [0, 0, 1, 1], [], []>} : vector<64x4xbf16>, vector<4x64xbf16>, vector<64x64xf32> -> vector<64x64xf32>
    %21 = arith.addf %16, %20 : vector<64x64xf32>
    %c2 = arith.constant 2 : index
    %c0_11 = arith.constant 0 : index
    %c0_12 = arith.constant 0 : index
    %22 = vector.load %arg4[%c2, %c0_11, %c0_12] : memref<3x4x64xbf16, #tpu.memory_space<vmem>>, vector<1x4x64xbf16>
    %23 = vector.shape_cast %22 : vector<1x4x64xbf16> to vector<4x64xbf16>
    %24 = arith.truncf %12 : vector<64x4xf32> to vector<64x4xbf16>
    %cst_13 = arith.constant dense<0.000000e+00> : vector<64x64xf32>
    %25 = tpu.matmul %24, %23, %cst_13 {dimension_numbers = #tpu.dot_dimension_numbers<[1], [0], [0], [1], [0, 0, 1, 1], [], []>} : vector<64x4xbf16>, vector<4x64xbf16>, vector<64x64xf32> -> vector<64x64xf32>
    %26 = arith.addf %21, %25 : vector<64x64xf32>
    %c0_14 = arith.constant 0 : index
    %c0_15 = arith.constant 0 : index
    %27 = vector.load %arg5[%c0_14, %c0_15] : memref<1x64xf32, #tpu.memory_space<vmem>>, vector<1x64xf32>
    %28 = vector.broadcast %27 : vector<1x64xf32> to vector<64x64xf32>
    %29 = arith.addf %26, %28 : vector<64x64xf32>
    %cst_16 = arith.constant 0.000000e+00 : f32
    %30 = vector.broadcast %cst_16 : f32 to vector<64x64xf32>
    %31 = arith.cmpf ogt, %29, %30 : vector<64x64xf32>
    %cst_17 = arith.constant 2.000000e-01 : f32
    %32 = vector.broadcast %cst_17 : f32 to vector<64x64xf32>
    %33 = arith.mulf %32, %29 : vector<64x64xf32>
    %34 = arith.select %31, %29, %33 : vector<64x64xi1>, vector<64x64xf32>
    %35 = vector.extract_strided_slice %34 {offsets = [63, 0], sizes = [1, 64], strides = [1, 1]} : vector<64x64xf32> to vector<1x64xf32>
    %36 = vector.extract_strided_slice %34 {offsets = [0, 0], sizes = [63, 64], strides = [1, 1]} : vector<64x64xf32> to vector<63x64xf32>
    %37 = tpu.concatenate %35, %36 in 0 : vector<1x64xf32>, vector<63x64xf32> -> vector<64x64xf32>
    %38 = vector.broadcast %0 : vector<64x1xf32> to vector<64x64xf32>
    %39 = arith.mulf %37, %38 : vector<64x64xf32>
    %40 = vector.extract_strided_slice %34 {offsets = [1, 0], sizes = [63, 64], strides = [1, 1]} : vector<64x64xf32> to vector<63x64xf32>
    %41 = vector.extract_strided_slice %34 {offsets = [0, 0], sizes = [1, 64], strides = [1, 1]} : vector<64x64xf32> to vector<1x64xf32>
    %42 = tpu.concatenate %40, %41 in 0 : vector<63x64xf32>, vector<1x64xf32> -> vector<64x64xf32>
    %43 = vector.broadcast %1 : vector<64x1xf32> to vector<64x64xf32>
    %44 = arith.mulf %42, %43 : vector<64x64xf32>
    %c0_18 = arith.constant 0 : index
    %c0_19 = arith.constant 0 : index
    %c0_20 = arith.constant 0 : index
    %45 = vector.load %arg6[%c0_18, %c0_19, %c0_20] : memref<3x64x32xbf16, #tpu.memory_space<vmem>>, vector<1x64x32xbf16>
    %46 = vector.shape_cast %45 : vector<1x64x32xbf16> to vector<64x32xbf16>
    %47 = arith.truncf %39 : vector<64x64xf32> to vector<64x64xbf16>
    %cst_21 = arith.constant dense<0.000000e+00> : vector<64x32xf32>
    %48 = tpu.matmul %47, %46, %cst_21 {dimension_numbers = #tpu.dot_dimension_numbers<[1], [0], [0], [1], [0, 0, 1, 1], [], []>} : vector<64x64xbf16>, vector<64x32xbf16>, vector<64x32xf32> -> vector<64x32xf32>
    %c1_22 = arith.constant 1 : index
    %c0_23 = arith.constant 0 : index
    %c0_24 = arith.constant 0 : index
    %49 = vector.load %arg6[%c1_22, %c0_23, %c0_24] : memref<3x64x32xbf16, #tpu.memory_space<vmem>>, vector<1x64x32xbf16>
    %50 = vector.shape_cast %49 : vector<1x64x32xbf16> to vector<64x32xbf16>
    %51 = arith.truncf %34 : vector<64x64xf32> to vector<64x64xbf16>
    %cst_25 = arith.constant dense<0.000000e+00> : vector<64x32xf32>
    %52 = tpu.matmul %51, %50, %cst_25 {dimension_numbers = #tpu.dot_dimension_numbers<[1], [0], [0], [1], [0, 0, 1, 1], [], []>} : vector<64x64xbf16>, vector<64x32xbf16>, vector<64x32xf32> -> vector<64x32xf32>
    %53 = arith.addf %48, %52 : vector<64x32xf32>
    %c2_26 = arith.constant 2 : index
    %c0_27 = arith.constant 0 : index
    %c0_28 = arith.constant 0 : index
    %54 = vector.load %arg6[%c2_26, %c0_27, %c0_28] : memref<3x64x32xbf16, #tpu.memory_space<vmem>>, vector<1x64x32xbf16>
    %55 = vector.shape_cast %54 : vector<1x64x32xbf16> to vector<64x32xbf16>
    %56 = arith.truncf %44 : vector<64x64xf32> to vector<64x64xbf16>
    %cst_29 = arith.constant dense<0.000000e+00> : vector<64x32xf32>
    %57 = tpu.matmul %56, %55, %cst_29 {dimension_numbers = #tpu.dot_dimension_numbers<[1], [0], [0], [1], [0, 0, 1, 1], [], []>} : vector<64x64xbf16>, vector<64x32xbf16>, vector<64x32xf32> -> vector<64x32xf32>
    %58 = arith.addf %53, %57 : vector<64x32xf32>
    %c0_30 = arith.constant 0 : index
    %c0_31 = arith.constant 0 : index
    %59 = vector.load %arg7[%c0_30, %c0_31] : memref<1x32xf32, #tpu.memory_space<vmem>>, vector<1x32xf32>
    %60 = vector.broadcast %59 : vector<1x32xf32> to vector<64x32xf32>
    %61 = arith.addf %58, %60 : vector<64x32xf32>
    %c0_32 = arith.constant 0 : index
    %c0_33 = arith.constant 0 : index
    %62 = vector.load %arg1[%c0_32, %c0_33] : memref<64x16xf32, #tpu.memory_space<vmem>>, vector<64x16xf32>
    %63 = vector.broadcast %0 : vector<64x1xf32> to vector<64x16xf32>
    %64 = arith.mulf %62, %63 : vector<64x16xf32>
    %c0_34 = arith.constant 0 : index
    %c0_35 = arith.constant 0 : index
    %c0_36 = arith.constant 0 : index
    %65 = vector.load %arg9[%c0_34, %c0_35, %c0_36] : memref<3x16x64xbf16, #tpu.memory_space<vmem>>, vector<1x16x64xbf16>
    %66 = vector.shape_cast %65 : vector<1x16x64xbf16> to vector<16x64xbf16>
    %67 = arith.truncf %64 : vector<64x16xf32> to vector<64x16xbf16>
    %cst_37 = arith.constant dense<0.000000e+00> : vector<64x64xf32>
    %68 = tpu.matmul %67, %66, %cst_37 {dimension_numbers = #tpu.dot_dimension_numbers<[1], [0], [0], [1], [0, 0, 1, 1], [], []>} : vector<64x16xbf16>, vector<16x64xbf16>, vector<64x64xf32> -> vector<64x64xf32>
    %c1_38 = arith.constant 1 : index
    %c0_39 = arith.constant 0 : index
    %c0_40 = arith.constant 0 : index
    %69 = vector.load %arg9[%c1_38, %c0_39, %c0_40] : memref<3x16x64xbf16, #tpu.memory_space<vmem>>, vector<1x16x64xbf16>
    %70 = vector.shape_cast %69 : vector<1x16x64xbf16> to vector<16x64xbf16>
    %71 = arith.truncf %62 : vector<64x16xf32> to vector<64x16xbf16>
    %cst_41 = arith.constant dense<0.000000e+00> : vector<64x64xf32>
    %72 = tpu.matmul %71, %70, %cst_41 {dimension_numbers = #tpu.dot_dimension_numbers<[1], [0], [0], [1], [0, 0, 1, 1], [], []>} : vector<64x16xbf16>, vector<16x64xbf16>, vector<64x64xf32> -> vector<64x64xf32>
    %73 = arith.addf %68, %72 : vector<64x64xf32>
    %74 = vector.broadcast %1 : vector<64x1xf32> to vector<64x16xf32>
    %75 = arith.mulf %62, %74 : vector<64x16xf32>
    %c2_42 = arith.constant 2 : index
    %c0_43 = arith.constant 0 : index
    %c0_44 = arith.constant 0 : index
    %76 = vector.load %arg9[%c2_42, %c0_43, %c0_44] : memref<3x16x64xbf16, #tpu.memory_space<vmem>>, vector<1x16x64xbf16>
    %77 = vector.shape_cast %76 : vector<1x16x64xbf16> to vector<16x64xbf16>
    %78 = arith.truncf %75 : vector<64x16xf32> to vector<64x16xbf16>
    %cst_45 = arith.constant dense<0.000000e+00> : vector<64x64xf32>
    %79 = tpu.matmul %78, %77, %cst_45 {dimension_numbers = #tpu.dot_dimension_numbers<[1], [0], [0], [1], [0, 0, 1, 1], [], []>} : vector<64x16xbf16>, vector<16x64xbf16>, vector<64x64xf32> -> vector<64x64xf32>
    %80 = arith.addf %73, %79 : vector<64x64xf32>
    %81 = vector.extract_strided_slice %61 {offsets = [63, 0], sizes = [1, 32], strides = [1, 1]} : vector<64x32xf32> to vector<1x32xf32>
    %82 = vector.extract_strided_slice %61 {offsets = [0, 0], sizes = [63, 32], strides = [1, 1]} : vector<64x32xf32> to vector<63x32xf32>
    %83 = tpu.concatenate %81, %82 in 0 : vector<1x32xf32>, vector<63x32xf32> -> vector<64x32xf32>
    %84 = vector.broadcast %0 : vector<64x1xf32> to vector<64x32xf32>
    %85 = arith.mulf %83, %84 : vector<64x32xf32>
    %86 = vector.extract_strided_slice %61 {offsets = [1, 0], sizes = [63, 32], strides = [1, 1]} : vector<64x32xf32> to vector<63x32xf32>
    %87 = vector.extract_strided_slice %61 {offsets = [0, 0], sizes = [1, 32], strides = [1, 1]} : vector<64x32xf32> to vector<1x32xf32>
    %88 = tpu.concatenate %86, %87 in 0 : vector<63x32xf32>, vector<1x32xf32> -> vector<64x32xf32>
    %89 = vector.broadcast %1 : vector<64x1xf32> to vector<64x32xf32>
    %90 = arith.mulf %88, %89 : vector<64x32xf32>
    %c0_46 = arith.constant 0 : index
    %c0_47 = arith.constant 0 : index
    %c0_48 = arith.constant 0 : index
    %91 = vector.load %arg8[%c0_46, %c0_47, %c0_48] : memref<3x32x64xbf16, #tpu.memory_space<vmem>>, vector<1x32x64xbf16>
    %92 = vector.shape_cast %91 : vector<1x32x64xbf16> to vector<32x64xbf16>
    %93 = arith.truncf %85 : vector<64x32xf32> to vector<64x32xbf16>
    %cst_49 = arith.constant dense<0.000000e+00> : vector<64x64xf32>
    %94 = tpu.matmul %93, %92, %cst_49 {dimension_numbers = #tpu.dot_dimension_numbers<[1], [0], [0], [1], [0, 0, 1, 1], [], []>} : vector<64x32xbf16>, vector<32x64xbf16>, vector<64x64xf32> -> vector<64x64xf32>
    %c1_50 = arith.constant 1 : index
    %c0_51 = arith.constant 0 : index
    %c0_52 = arith.constant 0 : index
    %95 = vector.load %arg8[%c1_50, %c0_51, %c0_52] : memref<3x32x64xbf16, #tpu.memory_space<vmem>>, vector<1x32x64xbf16>
    %96 = vector.shape_cast %95 : vector<1x32x64xbf16> to vector<32x64xbf16>
    %97 = arith.truncf %61 : vector<64x32xf32> to vector<64x32xbf16>
    %cst_53 = arith.constant dense<0.000000e+00> : vector<64x64xf32>
    %98 = tpu.matmul %97, %96, %cst_53 {dimension_numbers = #tpu.dot_dimension_numbers<[1], [0], [0], [1], [0, 0, 1, 1], [], []>} : vector<64x32xbf16>, vector<32x64xbf16>, vector<64x64xf32> -> vector<64x64xf32>
    %99 = arith.addf %94, %98 : vector<64x64xf32>
    %c2_54 = arith.constant 2 : index
    %c0_55 = arith.constant 0 : index
    %c0_56 = arith.constant 0 : index
    %100 = vector.load %arg8[%c2_54, %c0_55, %c0_56] : memref<3x32x64xbf16, #tpu.memory_space<vmem>>, vector<1x32x64xbf16>
    %101 = vector.shape_cast %100 : vector<1x32x64xbf16> to vector<32x64xbf16>
    %102 = arith.truncf %90 : vector<64x32xf32> to vector<64x32xbf16>
    %cst_57 = arith.constant dense<0.000000e+00> : vector<64x64xf32>
    %103 = tpu.matmul %102, %101, %cst_57 {dimension_numbers = #tpu.dot_dimension_numbers<[1], [0], [0], [1], [0, 0, 1, 1], [], []>} : vector<64x32xbf16>, vector<32x64xbf16>, vector<64x64xf32> -> vector<64x64xf32>
    %104 = arith.addf %99, %103 : vector<64x64xf32>
    %105 = arith.addf %104, %80 : vector<64x64xf32>
    %c0_58 = arith.constant 0 : index
    %c0_59 = arith.constant 0 : index
    %106 = vector.load %arg10[%c0_58, %c0_59] : memref<1x64xf32, #tpu.memory_space<vmem>>, vector<1x64xf32>
    %107 = vector.broadcast %106 : vector<1x64xf32> to vector<64x64xf32>
    %108 = arith.addf %105, %107 : vector<64x64xf32>
    %cst_60 = arith.constant 0.000000e+00 : f32
    %109 = vector.broadcast %cst_60 : f32 to vector<64x64xf32>
    %110 = arith.cmpf ogt, %108, %109 : vector<64x64xf32>
    %cst_61 = arith.constant 2.000000e-01 : f32
    %111 = vector.broadcast %cst_61 : f32 to vector<64x64xf32>
    %112 = arith.mulf %111, %108 : vector<64x64xf32>
    %113 = arith.select %110, %108, %112 : vector<64x64xi1>, vector<64x64xf32>
    %114 = vector.extract_strided_slice %113 {offsets = [63, 0], sizes = [1, 64], strides = [1, 1]} : vector<64x64xf32> to vector<1x64xf32>
    %115 = vector.extract_strided_slice %113 {offsets = [0, 0], sizes = [63, 64], strides = [1, 1]} : vector<64x64xf32> to vector<63x64xf32>
    %116 = tpu.concatenate %114, %115 in 0 : vector<1x64xf32>, vector<63x64xf32> -> vector<64x64xf32>
    %117 = vector.broadcast %0 : vector<64x1xf32> to vector<64x64xf32>
    %118 = arith.mulf %116, %117 : vector<64x64xf32>
    %119 = vector.extract_strided_slice %113 {offsets = [1, 0], sizes = [63, 64], strides = [1, 1]} : vector<64x64xf32> to vector<63x64xf32>
    %120 = vector.extract_strided_slice %113 {offsets = [0, 0], sizes = [1, 64], strides = [1, 1]} : vector<64x64xf32> to vector<1x64xf32>
    %121 = tpu.concatenate %119, %120 in 0 : vector<63x64xf32>, vector<1x64xf32> -> vector<64x64xf32>
    %122 = vector.broadcast %1 : vector<64x1xf32> to vector<64x64xf32>
    %123 = arith.mulf %121, %122 : vector<64x64xf32>
    %c0_62 = arith.constant 0 : index
    %c0_63 = arith.constant 0 : index
    %c0_64 = arith.constant 0 : index
    %124 = vector.load %arg11[%c0_62, %c0_63, %c0_64] : memref<3x64x8xbf16, #tpu.memory_space<vmem>>, vector<1x64x8xbf16>
    %125 = vector.shape_cast %124 : vector<1x64x8xbf16> to vector<64x8xbf16>
    %126 = arith.truncf %118 : vector<64x64xf32> to vector<64x64xbf16>
    %cst_65 = arith.constant dense<0.000000e+00> : vector<64x8xf32>
    %127 = tpu.matmul %126, %125, %cst_65 {dimension_numbers = #tpu.dot_dimension_numbers<[1], [0], [0], [1], [0, 0, 1, 1], [], []>} : vector<64x64xbf16>, vector<64x8xbf16>, vector<64x8xf32> -> vector<64x8xf32>
    %c1_66 = arith.constant 1 : index
    %c0_67 = arith.constant 0 : index
    %c0_68 = arith.constant 0 : index
    %128 = vector.load %arg11[%c1_66, %c0_67, %c0_68] : memref<3x64x8xbf16, #tpu.memory_space<vmem>>, vector<1x64x8xbf16>
    %129 = vector.shape_cast %128 : vector<1x64x8xbf16> to vector<64x8xbf16>
    %130 = arith.truncf %113 : vector<64x64xf32> to vector<64x64xbf16>
    %cst_69 = arith.constant dense<0.000000e+00> : vector<64x8xf32>
    %131 = tpu.matmul %130, %129, %cst_69 {dimension_numbers = #tpu.dot_dimension_numbers<[1], [0], [0], [1], [0, 0, 1, 1], [], []>} : vector<64x64xbf16>, vector<64x8xbf16>, vector<64x8xf32> -> vector<64x8xf32>
    %132 = arith.addf %127, %131 : vector<64x8xf32>
    %c2_70 = arith.constant 2 : index
    %c0_71 = arith.constant 0 : index
    %c0_72 = arith.constant 0 : index
    %133 = vector.load %arg11[%c2_70, %c0_71, %c0_72] : memref<3x64x8xbf16, #tpu.memory_space<vmem>>, vector<1x64x8xbf16>
    %134 = vector.shape_cast %133 : vector<1x64x8xbf16> to vector<64x8xbf16>
    %135 = arith.truncf %123 : vector<64x64xf32> to vector<64x64xbf16>
    %cst_73 = arith.constant dense<0.000000e+00> : vector<64x8xf32>
    %136 = tpu.matmul %135, %134, %cst_73 {dimension_numbers = #tpu.dot_dimension_numbers<[1], [0], [0], [1], [0, 0, 1, 1], [], []>} : vector<64x64xbf16>, vector<64x8xbf16>, vector<64x8xf32> -> vector<64x8xf32>
    %137 = arith.addf %132, %136 : vector<64x8xf32>
    %c0_74 = arith.constant 0 : index
    %c0_75 = arith.constant 0 : index
    %138 = vector.load %arg12[%c0_74, %c0_75] : memref<1x8xf32, #tpu.memory_space<vmem>>, vector<1x8xf32>
    %139 = vector.broadcast %138 : vector<1x8xf32> to vector<64x8xf32>
    %140 = arith.addf %137, %139 : vector<64x8xf32>
    %141 = tpu.transpose %140, [1, 0] : vector<64x8xf32> -> vector<8x64xf32>
    %c0_76 = arith.constant 0 : index
    %c0_77 = arith.constant 0 : index
    %142 = vector.load %arg13[%c0_76, %c0_77] : memref<8x64xf32, #tpu.memory_space<vmem>>, vector<8x64xf32>
    tpu.vector_store %arg13[%c0_76, %c0_77], %141 {strides = array<i32>} : memref<8x64xf32, #tpu.memory_space<vmem>>, vector<8x64xf32>,
    return
  }
}

</mosaic_0001>

<llo_original>
// kernel: base_trainer_forward.3
$region0: #{base_trainer_forward.3}
  #allocation0 [shape = 'u32[]', space=smem, size = 0x4, offset = 0x4, fixed_abs, tag = 'smem constant byte address 0x4 - core index']
  #allocation1 [shape = 'u32[72,128]{1,0:T(1,128)}', space=vmem, size = 0x9000, scoped, tag = 'internal scratch']
  %s0 = inlined_call_operand.vmem [shape: f32[64,4], index: 0, kind: input, shape index: {}]
  %s1 = inlined_call_operand.vmem [shape: f32[64,16], index: 1, kind: input, shape index: {}]
  %s2 = inlined_call_operand.vmem [shape: f32[64,1], index: 2, kind: input, shape index: {}]
  %s3 = inlined_call_operand.vmem [shape: f32[64,1], index: 3, kind: input, shape index: {}]
  %s4 = inlined_call_operand.vmem [shape: bf16[3,4,64], index: 4, kind: input, shape index: {}]
  %s5 = inlined_call_operand.vmem [shape: f32[1,64], index: 5, kind: input, shape index: {}]
  %s6 = inlined_call_operand.vmem [shape: bf16[3,64,32], index: 6, kind: input, shape index: {}]
  %s7 = inlined_call_operand.vmem [shape: f32[1,32], index: 7, kind: input, shape index: {}]
  %s8 = inlined_call_operand.vmem [shape: bf16[3,32,64], index: 8, kind: input, shape index: {}]
  %s9 = inlined_call_operand.vmem [shape: bf16[3,16,64], index: 9, kind: input, shape index: {}]
  %s10 = inlined_call_operand.vmem [shape: f32[1,64], index: 10, kind: input, shape index: {}]
  %s11 = inlined_call_operand.vmem [shape: bf16[3,64,8], index: 11, kind: input, shape index: {}]
  %s12 = inlined_call_operand.vmem [shape: f32[1,8], index: 12, kind: input, shape index: {}]
  %s13 = inlined_call_operand.vmem [shape: f32[8,64], index: 13, kind: output, shape index: {}]
  %s14 = sld [smem:[#allocation0]]
  $region62: #{base_trainer_forward.3} parent=0
    _
  %s16 = ssub.s32 1, %s14
  %s17 = scalar_select 0, %s16, %s14
  // Predicated region
  $region2: #{base_trainer_forward.3} parent=0 // pred_check
    _
  $region3: #{base_trainer_forward.3} parent=0 // pred_check_branch
    %19 = sbr.rel (0) target = $region5
  $region4: #{base_trainer_forward.3} parent=0 // pred_region
    _
  $region5: #{base_trainer_forward.3} parent=0 // pred_fallthru
    _
  // Predicated region
  $region6: #{base_trainer_forward.3} parent=0 // pred_check
    _
  $region7: #{base_trainer_forward.3} parent=0 // pred_check_branch
    %21 = sbr.rel (0) target = $region9
  $region8: #{base_trainer_forward.3} parent=0 // pred_region
    _
  $region9: #{base_trainer_forward.3} parent=0 // pred_fallthru
    _
  // Predicated region
  $region10: #{base_trainer_forward.3} parent=0 // pred_check
    _
  $region11: #{base_trainer_forward.3} parent=0 // pred_check_branch
    %23 = sbr.rel (0) target = $region13
  $region12: #{base_trainer_forward.3} parent=0 // pred_region
    _
  $region13: #{base_trainer_forward.3} parent=0 // pred_fallthru
    _
  // Predicated region
  $region14: #{base_trainer_forward.3} parent=0 // pred_check
    _
  $region15: #{base_trainer_forward.3} parent=0 // pred_check_branch
    %25 = sbr.rel (0) target = $region17
  $region16: #{base_trainer_forward.3} parent=0 // pred_region
    _
  $region17: #{base_trainer_forward.3} parent=0 // pred_fallthru
    _
  // Predicated region
  $region18: #{base_trainer_forward.3} parent=0 // pred_check
    _
  $region19: #{base_trainer_forward.3} parent=0 // pred_check_branch
    %27 = sbr.rel (0) target = $region21
  $region20: #{base_trainer_forward.3} parent=0 // pred_region
    _
  $region21: #{base_trainer_forward.3} parent=0 // pred_fallthru
    _
  // Predicated region
  $region22: #{base_trainer_forward.3} parent=0 // pred_check
    _
  $region23: #{base_trainer_forward.3} parent=0 // pred_check_branch
    %29 = sbr.rel (0) target = $region25
  $region24: #{base_trainer_forward.3} parent=0 // pred_region
    _
  $region25: #{base_trainer_forward.3} parent=0 // pred_fallthru
    _
  // Predicated region
  $region26: #{base_trainer_forward.3} parent=0 // pred_check
    _
  $region27: #{base_trainer_forward.3} parent=0 // pred_check_branch
    %31 = sbr.rel (0) target = $region29
  $region28: #{base_trainer_forward.3} parent=0 // pred_region
    _
  $region29: #{base_trainer_forward.3} parent=0 // pred_fallthru
    _
  // Predicated region
  $region30: #{base_trainer_forward.3} parent=0 // pred_check
    _
  $region31: #{base_trainer_forward.3} parent=0 // pred_check_branch
    %33 = sbr.rel (0) target = $region33
  $region32: #{base_trainer_forward.3} parent=0 // pred_region
    _
  $region33: #{base_trainer_forward.3} parent=0 // pred_fallthru
    _
  // Predicated region
  $region34: #{base_trainer_forward.3} parent=0 // pred_check
    _
  $region35: #{base_trainer_forward.3} parent=0 // pred_check_branch
    %35 = sbr.rel (0) target = $region37
  $region36: #{base_trainer_forward.3} parent=0 // pred_region
    _
  $region37: #{base_trainer_forward.3} parent=0 // pred_fallthru
    _
  // Predicated region
  $region38: #{base_trainer_forward.3} parent=0 // pred_check
    _
  $region39: #{base_trainer_forward.3} parent=0 // pred_check_branch
    %37 = sbr.rel (0) target = $region41
  $region40: #{base_trainer_forward.3} parent=0 // pred_region
    _
  $region41: #{base_trainer_forward.3} parent=0 // pred_fallthru
    _
  // Predicated region
  $region42: #{base_trainer_forward.3} parent=0 // pred_check
    _
  $region43: #{base_trainer_forward.3} parent=0 // pred_check_branch
    %39 = sbr.rel (0) target = $region45
  $region44: #{base_trainer_forward.3} parent=0 // pred_region
    _
  $region45: #{base_trainer_forward.3} parent=0 // pred_fallthru
    _
  // Predicated region
  $region46: #{base_trainer_forward.3} parent=0 // pred_check
    _
  $region47: #{base_trainer_forward.3} parent=0 // pred_check_branch
    %41 = sbr.rel (0) target = $region49
  $region48: #{base_trainer_forward.3} parent=0 // pred_region
    _
  $region49: #{base_trainer_forward.3} parent=0 // pred_fallthru
    _
  // Predicated region
  $region50: #{base_trainer_forward.3} parent=0 // pred_check
    _
  $region51: #{base_trainer_forward.3} parent=0 // pred_check_branch
    %43 = sbr.rel (0) target = $region53
  $region52: #{base_trainer_forward.3} parent=0 // pred_region
    _
  $region53: #{base_trainer_forward.3} parent=0 // pred_fallthru
    _
  %v45 = vld [vmem:[%s2] sm:$0xff]
  %v46 = vld [vmem:[%s2 + $0x8] sm:$0xff]
  %v47 = vld [vmem:[%s2 + $0x10] sm:$0xff]
  %v48 = vld [vmem:[%s2 + $0x18] sm:$0xff]
  %v49 = vld [vmem:[%s2 + $0x20] sm:$0xff]
  %v50 = vld [vmem:[%s2 + $0x28] sm:$0xff]
  %v51 = vld [vmem:[%s2 + $0x30] sm:$0xff]
  %v52 = vld [vmem:[%s2 + $0x38] sm:$0xff]
  %v53 = vld [vmem:[%s3] sm:$0xff]
  %v54 = vld [vmem:[%s3 + $0x8] sm:$0xff]
  %v55 = vld [vmem:[%s3 + $0x10] sm:$0xff]
  %v56 = vld [vmem:[%s3 + $0x18] sm:$0xff]
  %v57 = vld [vmem:[%s3 + $0x20] sm:$0xff]
  %v58 = vld [vmem:[%s3 + $0x28] sm:$0xff]
  %v59 = vld [vmem:[%s3 + $0x30] sm:$0xff]
  %v60 = vld [vmem:[%s3 + $0x38] sm:$0xff]
  %v61 = vld [vmem:[%s0] sm:$0xff]
  %v62 = vld [vmem:[%s0 + $0x8] sm:$0xff]
  %v63 = vld [vmem:[%s0 + $0x10] sm:$0xff]
  %v64 = vld [vmem:[%s0 + $0x18] sm:$0xff]
  %v65 = vld [vmem:[%s0 + $0x20] sm:$0xff]
  %v66 = vld [vmem:[%s0 + $0x28] sm:$0xff]
  %v67 = vld [vmem:[%s0 + $0x30] sm:$0xff]
  %v68 = vld [vmem:[%s0 + $0x38] sm:$0xff]
  %v70 = vrot.slane %v68, 7
  %vm79 = vcmask 1040384
  %v80 = vrot.slane %v61, 7
  %v81 = vrot.slane %v62, 7
  %v82 = vsel %vm79, %v80, %v81
  %v83 = vrot.slane %v63, 7
  %v84 = vsel %vm79, %v81, %v83
  %v85 = vrot.slane %v64, 7
  %v86 = vsel %vm79, %v83, %v85
  %v87 = vrot.slane %v65, 7
  %v88 = vsel %vm79, %v85, %v87
  %v89 = vrot.slane %v66, 7
  %v90 = vsel %vm79, %v87, %v89
  %v91 = vrot.slane %v67, 7
  %v92 = vsel %vm79, %v89, %v91
  %v93 = vsel %vm79, %v91, %v70
  %v102 = vsel %vm79, %v70, %v80
  %104 = vset.pattern.permute.xlu0 0
  %105 = vperm.xlu0 %104, %v45
  %v106 = vpop.permute.xlu0 %105
  %109 = vset.pattern.permute.xlu0 0
  %110 = vperm.xlu0 %109, %v46
  %v111 = vpop.permute.xlu0 %110
  %114 = vset.pattern.permute.xlu0 0
  %115 = vperm.xlu0 %114, %v47
  %v116 = vpop.permute.xlu0 %115
  %119 = vset.pattern.permute.xlu0 0
  %120 = vperm.xlu0 %119, %v48
  %v121 = vpop.permute.xlu0 %120
  %124 = vset.pattern.permute.xlu0 0
  %125 = vperm.xlu0 %124, %v49
  %v126 = vpop.permute.xlu0 %125
  %129 = vset.pattern.permute.xlu0 0
  %130 = vperm.xlu0 %129, %v50
  %v131 = vpop.permute.xlu0 %130
  %134 = vset.pattern.permute.xlu0 0
  %135 = vperm.xlu0 %134, %v51
  %v136 = vpop.permute.xlu0 %135
  %139 = vset.pattern.permute.xlu0 0
  %140 = vperm.xlu0 %139, %v52
  %v141 = vpop.permute.xlu0 %140
  %v143 = vmul.f32 %v102, %v106
  %v144 = vmul.f32 %v82, %v111
  %v145 = vmul.f32 %v84, %v116
  %v146 = vmul.f32 %v86, %v121
  %v147 = vmul.f32 %v88, %v126
  %v148 = vmul.f32 %v90, %v131
  %v149 = vmul.f32 %v92, %v136
  %v150 = vmul.f32 %v93, %v141
  %vm151 = vcmask 1046528
  %v152 = vrot.slane %v61, 1
  %v153 = vrot.slane %v62, 1
  %v154 = vsel %vm151, %v152, %v153
  %v155 = vrot.slane %v63, 1
  %v156 = vsel %vm151, %v153, %v155
  %v157 = vrot.slane %v64, 1
  %v158 = vsel %vm151, %v155, %v157
  %v159 = vrot.slane %v65, 1
  %v160 = vsel %vm151, %v157, %v159
  %v161 = vrot.slane %v66, 1
  %v162 = vsel %vm151, %v159, %v161
  %v163 = vrot.slane %v67, 1
  %v164 = vsel %vm151, %v161, %v163
  %v165 = vrot.slane %v68, 1
  %v166 = vsel %vm151, %v163, %v165
  %v176 = vsel %vm151, %v165, %v152
  %178 = vset.pattern.permute.xlu0 0
  %179 = vperm.xlu0 %178, %v53
  %v180 = vpop.permute.xlu0 %179
  %183 = vset.pattern.permute.xlu0 0
  %184 = vperm.xlu0 %183, %v54
  %v185 = vpop.permute.xlu0 %184
  %188 = vset.pattern.permute.xlu0 0
  %189 = vperm.xlu0 %188, %v55
  %v190 = vpop.permute.xlu0 %189
  %193 = vset.pattern.permute.xlu0 0
  %194 = vperm.xlu0 %193, %v56
  %v195 = vpop.permute.xlu0 %194
  %198 = vset.pattern.permute.xlu0 0
  %199 = vperm.xlu0 %198, %v57
  %v200 = vpop.permute.xlu0 %199
  %203 = vset.pattern.permute.xlu0 0
  %204 = vperm.xlu0 %203, %v58
  %v205 = vpop.permute.xlu0 %204
  %208 = vset.pattern.permute.xlu0 0
  %209 = vperm.xlu0 %208, %v59
  %v210 = vpop.permute.xlu0 %209
  %213 = vset.pattern.permute.xlu0 0
  %214 = vperm.xlu0 %213, %v60
  %v215 = vpop.permute.xlu0 %214
  %v217 = vmul.f32 %v154, %v180
  %v218 = vmul.f32 %v156, %v185
  %v219 = vmul.f32 %v158, %v190
  %v220 = vmul.f32 %v160, %v195
  %v221 = vmul.f32 %v162, %v200
  %v222 = vmul.f32 %v164, %v205
  %v223 = vmul.f32 %v166, %v210
  %v224 = vmul.f32 %v176, %v215
  %v225 = vld [vmem:[%s4] sm:$0x3]
  %v226 = vpack.c.bf16 %v144, %v143
  %v227 = vpack.c.bf16 %v146, %v145
  %v228 = vpack.c.bf16 %v148, %v147
  %v229 = vpack.c.bf16 %v150, %v149
  %s230 = scalar_lea.vmem %s4, 2
  %v231 = vld [vmem:[%s230] sm:$0x3]
  %v232 = vpack.c.bf16 %v62, %v61
  %v233 = vpack.c.bf16 %v64, %v63
  %v234 = vpack.c.bf16 %v66, %v65
  %v235 = vpack.c.bf16 %v68, %v67
  %vm236 = vcmask 31744
  %v238 = vsel %vm236, %v232, 0
  %v241 = vsel %vm236, %v233, 0
  %v244 = vsel %vm236, %v234, 0
  %v247 = vsel %vm236, %v235, 0
  %vm249 = vcmask 1041408
  %v251 = vsel %vm249, %v231, 0
  %253 = vmatpush.bf16.msra.mxu0 0
  %254 = vmatpush.bf16.msra.mxu0 0
  %255 = vmatpush.bf16.msra.mxu0 0
  %256 = vmatpush.bf16.msra.mxu0 0
  %257 = vmatpush.bf16.msra.mxu0 0
  %258 = vmatpush.bf16.msra.mxu0 0
  %259 = vmatpush.bf16.msra.mxu0 0
  %260 = vmatpush.bf16.msra.mxu0 %v251
  %261 = vmatmul.bf16.gmra.mxu0 %v238
  %v262 = vpop.f32.mrf.mxu0
  %v263 = vadd.f32 0.0, %v262
  %v264 = vpop.f32.mrf.mxu0
  %v265 = vadd.f32 0.0, %v264
  %266 = vmatmul.bf16.gmra.mxu0 %v241
  %v267 = vpop.f32.mrf.mxu0
  %v268 = vadd.f32 0.0, %v267
  %v269 = vpop.f32.mrf.mxu0
  %v270 = vadd.f32 0.0, %v269
  %271 = vmatmul.bf16.gmra.mxu0 %v244
  %v272 = vpop.f32.mrf.mxu0
  %v273 = vadd.f32 0.0, %v272
  %v274 = vpop.f32.mrf.mxu0
  %v275 = vadd.f32 0.0, %v274
  %276 = vmatmul.bf16.gmra.mxu0 %v247
  %v277 = vpop.f32.mrf.mxu0
  %v278 = vadd.f32 0.0, %v277
  %v279 = vpop.f32.mrf.mxu0
  %v280 = vadd.f32 0.0, %v279
  %281 = vdwg.mxu0
  %v283 = vsel %vm236, %v226, 0
  %v286 = vsel %vm236, %v227, 0
  %v289 = vsel %vm236, %v228, 0
  %v292 = vsel %vm236, %v229, 0
  %v295 = vsel %vm249, %v225, 0
  %297 = vmatpush.bf16.msra.mxu0 0
  %298 = vmatpush.bf16.msra.mxu0 0
  %299 = vmatpush.bf16.msra.mxu0 0
  %300 = vmatpush.bf16.msra.mxu0 0
  %301 = vmatpush.bf16.msra.mxu0 0
  %302 = vmatpush.bf16.msra.mxu0 0
  %303 = vmatpush.bf16.msra.mxu0 0
  %304 = vmatpush.bf16.msra.mxu0 %v295
  %305 = vmatmul.bf16.gmra.mxu0 %v283
  %v306 = vpop.f32.mrf.mxu0
  %v307 = vadd.f32 %v263, %v306
  %v308 = vpop.f32.mrf.mxu0
  %v309 = vadd.f32 %v265, %v308
  %310 = vmatmul.bf16.gmra.mxu0 %v286
  %v311 = vpop.f32.mrf.mxu0
  %v312 = vadd.f32 %v268, %v311
  %v313 = vpop.f32.mrf.mxu0
  %v314 = vadd.f32 %v270, %v313
  %315 = vmatmul.bf16.gmra.mxu0 %v289
  %v316 = vpop.f32.mrf.mxu0
  %v317 = vadd.f32 %v273, %v316
  %v318 = vpop.f32.mrf.mxu0
  %v319 = vadd.f32 %v275, %v318
  %320 = vmatmul.bf16.gmra.mxu0 %v292
  %v321 = vpop.f32.mrf.mxu0
  %v322 = vadd.f32 %v278, %v321
  %v323 = vpop.f32.mrf.mxu0
  %v324 = vadd.f32 %v280, %v323
  %325 = vdwg.mxu0
  %s326 = scalar_lea.vmem %s4, 4
  %v327 = vld [vmem:[%s326] sm:$0x3]
  %v328 = vpack.c.bf16 %v218, %v217
  %v329 = vpack.c.bf16 %v220, %v219
  %v330 = vpack.c.bf16 %v222, %v221
  %v331 = vpack.c.bf16 %v224, %v223
  %v333 = vsel %vm236, %v328, 0
  %v336 = vsel %vm236, %v329, 0
  %v339 = vsel %vm236, %v330, 0
  %v342 = vsel %vm236, %v331, 0
  %v345 = vsel %vm249, %v327, 0
  %347 = vmatpush.bf16.msra.mxu0 0
  %348 = vmatpush.bf16.msra.mxu0 0
  %349 = vmatpush.bf16.msra.mxu0 0
  %350 = vmatpush.bf16.msra.mxu0 0
  %351 = vmatpush.bf16.msra.mxu0 0
  %352 = vmatpush.bf16.msra.mxu0 0
  %353 = vmatpush.bf16.msra.mxu0 0
  %354 = vmatpush.bf16.msra.mxu0 %v345
  %355 = vmatmul.bf16.gmra.mxu0 %v333
  %v356 = vpop.f32.mrf.mxu0
  %v357 = vadd.f32 0.0, %v356
  %v358 = vpop.f32.mrf.mxu0
  %v359 = vadd.f32 0.0, %v358
  %360 = vmatmul.bf16.gmra.mxu0 %v336
  %v361 = vpop.f32.mrf.mxu0
  %v362 = vadd.f32 0.0, %v361
  %v363 = vpop.f32.mrf.mxu0
  %v364 = vadd.f32 0.0, %v363
  %365 = vmatmul.bf16.gmra.mxu0 %v339
  %v366 = vpop.f32.mrf.mxu0
  %v367 = vadd.f32 0.0, %v366
  %v368 = vpop.f32.mrf.mxu0
  %v369 = vadd.f32 0.0, %v368
  %370 = vmatmul.bf16.gmra.mxu0 %v342
  %v371 = vpop.f32.mrf.mxu0
  %v372 = vadd.f32 0.0, %v371
  %v373 = vpop.f32.mrf.mxu0
  %v374 = vadd.f32 0.0, %v373
  %375 = vdwg.mxu0
  %v376 = vadd.f32 %v307, %v357
  %v377 = vadd.f32 %v309, %v359
  %v378 = vadd.f32 %v312, %v362
  %v379 = vadd.f32 %v314, %v364
  %v380 = vadd.f32 %v317, %v367
  %v381 = vadd.f32 %v319, %v369
  %v382 = vadd.f32 %v322, %v372
  %v383 = vadd.f32 %v324, %v374
  %v384 = vld [vmem:[%s5] sm:$0x1]
  %v386 = vperm.slane %v384, 0
  %v388 = vadd.f32 %v376, %v386
  %v389 = vadd.f32 %v377, %v386
  %v390 = vadd.f32 %v378, %v386
  %v391 = vadd.f32 %v379, %v386
  %v392 = vadd.f32 %v380, %v386
  %v393 = vadd.f32 %v381, %v386
  %v394 = vadd.f32 %v382, %v386
  %v395 = vadd.f32 %v383, %v386
  %vm396 = vcmp.gt.f32.partialorder %v388, 0.0
  %vm397 = vcmp.gt.f32.partialorder %v389, 0.0
  %vm398 = vcmp.gt.f32.partialorder %v390, 0.0
  %vm399 = vcmp.gt.f32.partialorder %v391, 0.0
  %vm400 = vcmp.gt.f32.partialorder %v392, 0.0
  %vm401 = vcmp.gt.f32.partialorder %v393, 0.0
  %vm402 = vcmp.gt.f32.partialorder %v394, 0.0
  %vm403 = vcmp.gt.f32.partialorder %v395, 0.0
  %v404 = vmul.f32 %v388, 0.2
  %v405 = vmul.f32 %v389, 0.2
  %v406 = vmul.f32 %v390, 0.2
  %v407 = vmul.f32 %v391, 0.2
  %v408 = vmul.f32 %v392, 0.2
  %v409 = vmul.f32 %v393, 0.2
  %v410 = vmul.f32 %v394, 0.2
  %v411 = vmul.f32 %v395, 0.2
  %v412 = vsel %vm396, %v388, %v404
  %v413 = vsel %vm397, %v389, %v405
  %v414 = vsel %vm398, %v390, %v406
  %v415 = vsel %vm399, %v391, %v407
  %v416 = vsel %vm400, %v392, %v408
  %v417 = vsel %vm401, %v393, %v409
  %v418 = vsel %vm402, %v394, %v410
  %v419 = vsel %vm403, %v395, %v411
  %v421 = vrot.slane %v419, 7
  %v430 = vrot.slane %v412, 7
  %v431 = vrot.slane %v413, 7
  %v432 = vsel %vm79, %v430, %v431
  %v433 = vrot.slane %v414, 7
  %v434 = vsel %vm79, %v431, %v433
  %v435 = vrot.slane %v415, 7
  %v436 = vsel %vm79, %v433, %v435
  %v437 = vrot.slane %v416, 7
  %v438 = vsel %vm79, %v435, %v437
  %v439 = vrot.slane %v417, 7
  %v440 = vsel %vm79, %v437, %v439
  %v441 = vrot.slane %v418, 7
  %v442 = vsel %vm79, %v439, %v441
  %v443 = vsel %vm79, %v441, %v421
  %v452 = vsel %vm79, %v421, %v430
  %v453 = vmul.f32 %v452, %v106
  %v454 = vmul.f32 %v432, %v111
  %v455 = vmul.f32 %v434, %v116
  %v456 = vmul.f32 %v436, %v121
  %v457 = vmul.f32 %v438, %v126
  %v458 = vmul.f32 %v440, %v131
  %v459 = vmul.f32 %v442, %v136
  %v460 = vmul.f32 %v443, %v141
  %v461 = vrot.slane %v412, 1
  %v462 = vrot.slane %v413, 1
  %v463 = vsel %vm151, %v461, %v462
  %v464 = vrot.slane %v414, 1
  %v465 = vsel %vm151, %v462, %v464
  %v466 = vrot.slane %v415, 1
  %v467 = vsel %vm151, %v464, %v466
  %v468 = vrot.slane %v416, 1
  %v469 = vsel %vm151, %v466, %v468
  %v470 = vrot.slane %v417, 1
  %v471 = vsel %vm151, %v468, %v470
  %v472 = vrot.slane %v418, 1
  %v473 = vsel %vm151, %v470, %v472
  %v474 = vrot.slane %v419, 1
  %v475 = vsel %vm151, %v472, %v474
  %v485 = vsel %vm151, %v474, %v461
  %v486 = vmul.f32 %v463, %v180
  %v487 = vmul.f32 %v465, %v185
  %v488 = vmul.f32 %v467, %v190
  %v489 = vmul.f32 %v469, %v195
  %v490 = vmul.f32 %v471, %v200
  %v491 = vmul.f32 %v473, %v205
  %v492 = vmul.f32 %v475, %v210
  %v493 = vmul.f32 %v485, %v215
  %v494 = vld [vmem:[%s6] sm:$0xf]
  %v495 = vld [vmem:[%s6 + $0x4] sm:$0xf]
  %v496 = vld [vmem:[%s6 + $0x8] sm:$0xf]
  %v497 = vld [vmem:[%s6 + $0xc] sm:$0xf]
  %v498 = vld [vmem:[%s6 + $0x10] sm:$0xf]
  %v499 = vld [vmem:[%s6 + $0x14] sm:$0xf]
  %v500 = vld [vmem:[%s6 + $0x18] sm:$0xf]
  %v501 = vld [vmem:[%s6 + $0x1c] sm:$0xf]
  %v502 = vpack.c.bf16 %v454, %v453
  %v503 = vpack.c.bf16 %v456, %v455
  %v504 = vpack.c.bf16 %v458, %v457
  %v505 = vpack.c.bf16 %v460, %v459
  %s506 = scalar_lea.vmem %s6, 32
  %v507 = vld [vmem:[%s506] sm:$0xf]
  %v508 = vld [vmem:[%s506 + $0x4] sm:$0xf]
  %v509 = vld [vmem:[%s506 + $0x8] sm:$0xf]
  %v510 = vld [vmem:[%s506 + $0xc] sm:$0xf]
  %v511 = vld [vmem:[%s506 + $0x10] sm:$0xf]
  %v512 = vld [vmem:[%s506 + $0x14] sm:$0xf]
  %v513 = vld [vmem:[%s506 + $0x18] sm:$0xf]
  %v514 = vld [vmem:[%s506 + $0x1c] sm:$0xf]
  %v515 = vpack.c.bf16 %v413, %v412
  %v516 = vpack.c.bf16 %v415, %v414
  %v517 = vpack.c.bf16 %v417, %v416
  %v518 = vpack.c.bf16 %v419, %v418
  %v527 = vunpack.c.l.b16 %v507
  %v528 = vunpack.c.l.b16 %v508
  %v529 = vunpack.c.l.b16 %v509
  %v530 = vunpack.c.l.b16 %v510
  %v531 = vunpack.c.l.b16 %v511
  %v532 = vunpack.c.l.b16 %v512
  %v533 = vunpack.c.l.b16 %v513
  %v534 = vunpack.c.l.b16 %v514
  %v535 = vpack.c.b16 %v528, %v527
  %v536 = vpack.c.b16 %v530, %v529
  %v537 = vpack.c.b16 %v532, %v531
  %v538 = vpack.c.b16 %v534, %v533
  %vm543 = vcmask 523264
  %v545 = vsel %vm543, %v515, 0
  %v548 = vsel %vm543, %v516, 0
  %v551 = vsel %vm543, %v517, 0
  %v554 = vsel %vm543, %v518, 0
  %556 = vmatpush.bf16.msra.mxu0 0
  %557 = vmatpush.bf16.msra.mxu0 0
  %558 = vmatpush.bf16.msra.mxu0 0
  %559 = vmatpush.bf16.msra.mxu0 0
  %560 = vmatpush.bf16.msra.mxu0 %v538
  %561 = vmatpush.bf16.msra.mxu0 %v537
  %562 = vmatpush.bf16.msra.mxu0 %v536
  %563 = vmatpush.bf16.msra.mxu0 %v535
  %564 = vmatmul.bf16.gmra.mxu0 %v545
  %v565 = vpop.f32.mrf.mxu0
  %v566 = vadd.f32 0.0, %v565
  %v567 = vpop.f32.mrf.mxu0
  %v568 = vadd.f32 0.0, %v567
  %569 = vmatmul.bf16.gmra.mxu0 %v548
  %v570 = vpop.f32.mrf.mxu0
  %v571 = vadd.f32 0.0, %v570
  %v572 = vpop.f32.mrf.mxu0
  %v573 = vadd.f32 0.0, %v572
  %574 = vmatmul.bf16.gmra.mxu0 %v551
  %v575 = vpop.f32.mrf.mxu0
  %v576 = vadd.f32 0.0, %v575
  %v577 = vpop.f32.mrf.mxu0
  %v578 = vadd.f32 0.0, %v577
  %579 = vmatmul.bf16.gmra.mxu0 %v554
  %v580 = vpop.f32.mrf.mxu0
  %v581 = vadd.f32 0.0, %v580
  %v582 = vpop.f32.mrf.mxu0
  %v583 = vadd.f32 0.0, %v582
  %584 = vdwg.mxu0
  %v593 = vunpack.c.l.b16 %v494
  %v594 = vunpack.c.l.b16 %v495
  %v595 = vunpack.c.l.b16 %v496
  %v596 = vunpack.c.l.b16 %v497
  %v597 = vunpack.c.l.b16 %v498
  %v598 = vunpack.c.l.b16 %v499
  %v599 = vunpack.c.l.b16 %v500
  %v600 = vunpack.c.l.b16 %v501
  %v601 = vpack.c.b16 %v594, %v593
  %v602 = vpack.c.b16 %v596, %v595
  %v603 = vpack.c.b16 %v598, %v597
  %v604 = vpack.c.b16 %v600, %v599
  %v610 = vsel %vm543, %v502, 0
  %v613 = vsel %vm543, %v503, 0
  %v616 = vsel %vm543, %v504, 0
  %v619 = vsel %vm543, %v505, 0
  %621 = vmatpush.bf16.msra.mxu0 0
  %622 = vmatpush.bf16.msra.mxu0 0
  %623 = vmatpush.bf16.msra.mxu0 0
  %624 = vmatpush.bf16.msra.mxu0 0
  %625 = vmatpush.bf16.msra.mxu0 %v604
  %626 = vmatpush.bf16.msra.mxu0 %v603
  %627 = vmatpush.bf16.msra.mxu0 %v602
  %628 = vmatpush.bf16.msra.mxu0 %v601
  %629 = vmatmul.bf16.gmra.mxu0 %v610
  %v630 = vpop.f32.mrf.mxu0
  %v631 = vadd.f32 %v566, %v630
  %v632 = vpop.f32.mrf.mxu0
  %v633 = vadd.f32 %v568, %v632
  %634 = vmatmul.bf16.gmra.mxu0 %v613
  %v635 = vpop.f32.mrf.mxu0
  %v636 = vadd.f32 %v571, %v635
  %v637 = vpop.f32.mrf.mxu0
  %v638 = vadd.f32 %v573, %v637
  %639 = vmatmul.bf16.gmra.mxu0 %v616
  %v640 = vpop.f32.mrf.mxu0
  %v641 = vadd.f32 %v576, %v640
  %v642 = vpop.f32.mrf.mxu0
  %v643 = vadd.f32 %v578, %v642
  %644 = vmatmul.bf16.gmra.mxu0 %v619
  %v645 = vpop.f32.mrf.mxu0
  %v646 = vadd.f32 %v581, %v645
  %v647 = vpop.f32.mrf.mxu0
  %v648 = vadd.f32 %v583, %v647
  %649 = vdwg.mxu0
  %s650 = scalar_lea.vmem %s6, 64
  %v651 = vld [vmem:[%s650] sm:$0xf]
  %v652 = vld [vmem:[%s650 + $0x4] sm:$0xf]
  %v653 = vld [vmem:[%s650 + $0x8] sm:$0xf]
  %v654 = vld [vmem:[%s650 + $0xc] sm:$0xf]
  %v655 = vld [vmem:[%s650 + $0x10] sm:$0xf]
  %v656 = vld [vmem:[%s650 + $0x14] sm:$0xf]
  %v657 = vld [vmem:[%s650 + $0x18] sm:$0xf]
  %v658 = vld [vmem:[%s650 + $0x1c] sm:$0xf]
  %v659 = vpack.c.bf16 %v487, %v486
  %v660 = vpack.c.bf16 %v489, %v488
  %v661 = vpack.c.bf16 %v491, %v490
  %v662 = vpack.c.bf16 %v493, %v492
  %v671 = vunpack.c.l.b16 %v651
  %v672 = vunpack.c.l.b16 %v652
  %v673 = vunpack.c.l.b16 %v653
  %v674 = vunpack.c.l.b16 %v654
  %v675 = vunpack.c.l.b16 %v655
  %v676 = vunpack.c.l.b16 %v656
  %v677 = vunpack.c.l.b16 %v657
  %v678 = vunpack.c.l.b16 %v658
  %v679 = vpack.c.b16 %v672, %v671
  %v680 = vpack.c.b16 %v674, %v673
  %v681 = vpack.c.b16 %v676, %v675
  %v682 = vpack.c.b16 %v678, %v677
  %v688 = vsel %vm543, %v659, 0
  %v691 = vsel %vm543, %v660, 0
  %v694 = vsel %vm543, %v661, 0
  %v697 = vsel %vm543, %v662, 0
  %699 = vmatpush.bf16.msra.mxu0 0
  %700 = vmatpush.bf16.msra.mxu0 0
  %701 = vmatpush.bf16.msra.mxu0 0
  %702 = vmatpush.bf16.msra.mxu0 0
  %703 = vmatpush.bf16.msra.mxu0 %v682
  %704 = vmatpush.bf16.msra.mxu0 %v681
  %705 = vmatpush.bf16.msra.mxu0 %v680
  %706 = vmatpush.bf16.msra.mxu0 %v679
  %707 = vmatmul.bf16.gmra.mxu0 %v688
  %v708 = vpop.f32.mrf.mxu0
  %v709 = vadd.f32 0.0, %v708
  %v710 = vpop.f32.mrf.mxu0
  %v711 = vadd.f32 0.0, %v710
  %712 = vmatmul.bf16.gmra.mxu0 %v691
  %v713 = vpop.f32.mrf.mxu0
  %v714 = vadd.f32 0.0, %v713
  %v715 = vpop.f32.mrf.mxu0
  %v716 = vadd.f32 0.0, %v715
  %717 = vmatmul.bf16.gmra.mxu0 %v694
  %v718 = vpop.f32.mrf.mxu0
  %v719 = vadd.f32 0.0, %v718
  %v720 = vpop.f32.mrf.mxu0
  %v721 = vadd.f32 0.0, %v720
  %722 = vmatmul.bf16.gmra.mxu0 %v697
  %v723 = vpop.f32.mrf.mxu0
  %v724 = vadd.f32 0.0, %v723
  %v725 = vpop.f32.mrf.mxu0
  %v726 = vadd.f32 0.0, %v725
  %727 = vdwg.mxu0
  %v728 = vadd.f32 %v631, %v709
  %v729 = vadd.f32 %v633, %v711
  %v730 = vadd.f32 %v636, %v714
  %v731 = vadd.f32 %v638, %v716
  %v732 = vadd.f32 %v641, %v719
  %v733 = vadd.f32 %v643, %v721
  %v734 = vadd.f32 %v646, %v724
  %v735 = vadd.f32 %v648, %v726
  %v736 = vld [vmem:[%s7] sm:$0x1]
  %v738 = vperm.slane %v736, 0
  %v740 = vadd.f32 %v728, %v738
  %v741 = vadd.f32 %v729, %v738
  %v742 = vadd.f32 %v730, %v738
  %v743 = vadd.f32 %v731, %v738
  %v744 = vadd.f32 %v732, %v738
  %v745 = vadd.f32 %v733, %v738
  %v746 = vadd.f32 %v734, %v738
  %v747 = vadd.f32 %v735, %v738
  %v748 = vld [vmem:[%s1] sm:$0xff]
  %v749 = vld [vmem:[%s1 + $0x8] sm:$0xff]
  %v750 = vld [vmem:[%s1 + $0x10] sm:$0xff]
  %v751 = vld [vmem:[%s1 + $0x18] sm:$0xff]
  %v752 = vld [vmem:[%s1 + $0x20] sm:$0xff]
  %v753 = vld [vmem:[%s1 + $0x28] sm:$0xff]
  %v754 = vld [vmem:[%s1 + $0x30] sm:$0xff]
  %v755 = vld [vmem:[%s1 + $0x38] sm:$0xff]
  %v756 = vmul.f32 %v748, %v106
  %v757 = vmul.f32 %v749, %v111
  %v758 = vmul.f32 %v750, %v116
  %v759 = vmul.f32 %v751, %v121
  %v760 = vmul.f32 %v752, %v126
  %v761 = vmul.f32 %v753, %v131
  %v762 = vmul.f32 %v754, %v136
  %v763 = vmul.f32 %v755, %v141
  %v764 = vld [vmem:[%s9] sm:$0xf]
  %v765 = vld [vmem:[%s9 + $0x4] sm:$0xf]
  %v766 = vpack.c.bf16 %v757, %v756
  %v767 = vpack.c.bf16 %v759, %v758
  %v768 = vpack.c.bf16 %v761, %v760
  %v769 = vpack.c.bf16 %v763, %v762
  %s770 = scalar_lea.vmem %s9, 8
  %v771 = vld [vmem:[%s770] sm:$0xf]
  %v772 = vld [vmem:[%s770 + $0x4] sm:$0xf]
  %v773 = vpack.c.bf16 %v749, %v748
  %v774 = vpack.c.bf16 %v751, %v750
  %v775 = vpack.c.bf16 %v753, %v752
  %v776 = vpack.c.bf16 %v755, %v754
  %v779 = vunpack.c.l.b16 %v771
  %v780 = vunpack.c.l.b16 %v772
  %v781 = vpack.c.b16 %v780, %v779
  %vm783 = vcmask 130048
  %v785 = vsel %vm783, %v773, 0
  %v788 = vsel %vm783, %v774, 0
  %v791 = vsel %vm783, %v775, 0
  %v794 = vsel %vm783, %v776, 0
  %796 = vmatpush.bf16.msra.mxu0 0
  %797 = vmatpush.bf16.msra.mxu0 0
  %798 = vmatpush.bf16.msra.mxu0 0
  %799 = vmatpush.bf16.msra.mxu0 0
  %800 = vmatpush.bf16.msra.mxu0 0
  %801 = vmatpush.bf16.msra.mxu0 0
  %802 = vmatpush.bf16.msra.mxu0 0
  %803 = vmatpush.bf16.msra.mxu0 %v781
  %804 = vmatmul.bf16.gmra.mxu0 %v785
  %v805 = vpop.f32.mrf.mxu0
  %v806 = vadd.f32 0.0, %v805
  %v807 = vpop.f32.mrf.mxu0
  %v808 = vadd.f32 0.0, %v807
  %809 = vmatmul.bf16.gmra.mxu0 %v788
  %v810 = vpop.f32.mrf.mxu0
  %v811 = vadd.f32 0.0, %v810
  %v812 = vpop.f32.mrf.mxu0
  %v813 = vadd.f32 0.0, %v812
  %814 = vmatmul.bf16.gmra.mxu0 %v791
  %v815 = vpop.f32.mrf.mxu0
  %v816 = vadd.f32 0.0, %v815
  %v817 = vpop.f32.mrf.mxu0
  %v818 = vadd.f32 0.0, %v817
  %819 = vmatmul.bf16.gmra.mxu0 %v794
  %v820 = vpop.f32.mrf.mxu0
  %v821 = vadd.f32 0.0, %v820
  %v822 = vpop.f32.mrf.mxu0
  %v823 = vadd.f32 0.0, %v822
  %824 = vdwg.mxu0
  %v827 = vunpack.c.l.b16 %v764
  %v828 = vunpack.c.l.b16 %v765
  %v829 = vpack.c.b16 %v828, %v827
  %v832 = vsel %vm783, %v766, 0
  %v835 = vsel %vm783, %v767, 0
  %v838 = vsel %vm783, %v768, 0
  %v841 = vsel %vm783, %v769, 0
  %843 = vmatpush.bf16.msra.mxu0 0
  %844 = vmatpush.bf16.msra.mxu0 0
  %845 = vmatpush.bf16.msra.mxu0 0
  %846 = vmatpush.bf16.msra.mxu0 0
  %847 = vmatpush.bf16.msra.mxu0 0
  %848 = vmatpush.bf16.msra.mxu0 0
  %849 = vmatpush.bf16.msra.mxu0 0
  %850 = vmatpush.bf16.msra.mxu0 %v829
  %851 = vmatmul.bf16.gmra.mxu0 %v832
  %v852 = vpop.f32.mrf.mxu0
  %v853 = vadd.f32 %v806, %v852
  %v854 = vpop.f32.mrf.mxu0
  %v855 = vadd.f32 %v808, %v854
  %856 = vmatmul.bf16.gmra.mxu0 %v835
  %v857 = vpop.f32.mrf.mxu0
  %v858 = vadd.f32 %v811, %v857
  %v859 = vpop.f32.mrf.mxu0
  %v860 = vadd.f32 %v813, %v859
  %861 = vmatmul.bf16.gmra.mxu0 %v838
  %v862 = vpop.f32.mrf.mxu0
  %v863 = vadd.f32 %v816, %v862
  %v864 = vpop.f32.mrf.mxu0
  %v865 = vadd.f32 %v818, %v864
  %866 = vmatmul.bf16.gmra.mxu0 %v841
  %v867 = vpop.f32.mrf.mxu0
  %v868 = vadd.f32 %v821, %v867
  %v869 = vpop.f32.mrf.mxu0
  %v870 = vadd.f32 %v823, %v869
  %871 = vdwg.mxu0
  %v872 = vmul.f32 %v748, %v180
  %v873 = vmul.f32 %v749, %v185
  %v874 = vmul.f32 %v750, %v190
  %v875 = vmul.f32 %v751, %v195
  %v876 = vmul.f32 %v752, %v200
  %v877 = vmul.f32 %v753, %v205
  %v878 = vmul.f32 %v754, %v210
  %v879 = vmul.f32 %v755, %v215
  %s880 = scalar_lea.vmem %s9, 16
  %v881 = vld [vmem:[%s880] sm:$0xf]
  %v882 = vld [vmem:[%s880 + $0x4] sm:$0xf]
  %v883 = vpack.c.bf16 %v873, %v872
  %v884 = vpack.c.bf16 %v875, %v874
  %v885 = vpack.c.bf16 %v877, %v876
  %v886 = vpack.c.bf16 %v879, %v878
  %v889 = vunpack.c.l.b16 %v881
  %v890 = vunpack.c.l.b16 %v882
  %v891 = vpack.c.b16 %v890, %v889
  %v894 = vsel %vm783, %v883, 0
  %v897 = vsel %vm783, %v884, 0
  %v900 = vsel %vm783, %v885, 0
  %v903 = vsel %vm783, %v886, 0
  %905 = vmatpush.bf16.msra.mxu0 0
  %906 = vmatpush.bf16.msra.mxu0 0
  %907 = vmatpush.bf16.msra.mxu0 0
  %908 = vmatpush.bf16.msra.mxu0 0
  %909 = vmatpush.bf16.msra.mxu0 0
  %910 = vmatpush.bf16.msra.mxu0 0
  %911 = vmatpush.bf16.msra.mxu0 0
  %912 = vmatpush.bf16.msra.mxu0 %v891
  %913 = vmatmul.bf16.gmra.mxu0 %v894
  %v914 = vpop.f32.mrf.mxu0
  %v915 = vadd.f32 0.0, %v914
  %v916 = vpop.f32.mrf.mxu0
  %v917 = vadd.f32 0.0, %v916
  %918 = vmatmul.bf16.gmra.mxu0 %v897
  %v919 = vpop.f32.mrf.mxu0
  %v920 = vadd.f32 0.0, %v919
  %v921 = vpop.f32.mrf.mxu0
  %v922 = vadd.f32 0.0, %v921
  %923 = vmatmul.bf16.gmra.mxu0 %v900
  %v924 = vpop.f32.mrf.mxu0
  %v925 = vadd.f32 0.0, %v924
  %v926 = vpop.f32.mrf.mxu0
  %v927 = vadd.f32 0.0, %v926
  %928 = vmatmul.bf16.gmra.mxu0 %v903
  %v929 = vpop.f32.mrf.mxu0
  %v930 = vadd.f32 0.0, %v929
  %v931 = vpop.f32.mrf.mxu0
  %v932 = vadd.f32 0.0, %v931
  %933 = vdwg.mxu0
  %v934 = vadd.f32 %v853, %v915
  %v935 = vadd.f32 %v855, %v917
  %v936 = vadd.f32 %v858, %v920
  %v937 = vadd.f32 %v860, %v922
  %v938 = vadd.f32 %v863, %v925
  %v939 = vadd.f32 %v865, %v927
  %v940 = vadd.f32 %v868, %v930
  %v941 = vadd.f32 %v870, %v932
  %v943 = vrot.slane %v747, 7
  %v952 = vrot.slane %v740, 7
  %v953 = vrot.slane %v741, 7
  %v954 = vsel %vm79, %v952, %v953
  %v955 = vrot.slane %v742, 7
  %v956 = vsel %vm79, %v953, %v955
  %v957 = vrot.slane %v743, 7
  %v958 = vsel %vm79, %v955, %v957
  %v959 = vrot.slane %v744, 7
  %v960 = vsel %vm79, %v957, %v959
  %v961 = vrot.slane %v745, 7
  %v962 = vsel %vm79, %v959, %v961
  %v963 = vrot.slane %v746, 7
  %v964 = vsel %vm79, %v961, %v963
  %v965 = vsel %vm79, %v963, %v943
  %v974 = vsel %vm79, %v943, %v952
  %v975 = vmul.f32 %v974, %v106
  %v976 = vmul.f32 %v954, %v111
  %v977 = vmul.f32 %v956, %v116
  %v978 = vmul.f32 %v958, %v121
  %v979 = vmul.f32 %v960, %v126
  %v980 = vmul.f32 %v962, %v131
  %v981 = vmul.f32 %v964, %v136
  %v982 = vmul.f32 %v965, %v141
  %v983 = vrot.slane %v740, 1
  %v984 = vrot.slane %v741, 1
  %v985 = vsel %vm151, %v983, %v984
  %v986 = vrot.slane %v742, 1
  %v987 = vsel %vm151, %v984, %v986
  %v988 = vrot.slane %v743, 1
  %v989 = vsel %vm151, %v986, %v988
  %v990 = vrot.slane %v744, 1
  %v991 = vsel %vm151, %v988, %v990
  %v992 = vrot.slane %v745, 1
  %v993 = vsel %vm151, %v990, %v992
  %v994 = vrot.slane %v746, 1
  %v995 = vsel %vm151, %v992, %v994
  %v996 = vrot.slane %v747, 1
  %v997 = vsel %vm151, %v994, %v996
  %v1007 = vsel %vm151, %v996, %v983
  %v1008 = vmul.f32 %v985, %v180
  %v1009 = vmul.f32 %v987, %v185
  %v1010 = vmul.f32 %v989, %v190
  %v1011 = vmul.f32 %v991, %v195
  %v1012 = vmul.f32 %v993, %v200
  %v1013 = vmul.f32 %v995, %v205
  %v1014 = vmul.f32 %v997, %v210
  %v1015 = vmul.f32 %v1007, %v215
  %v1016 = vld [vmem:[%s8] sm:$0xf]
  %v1017 = vld [vmem:[%s8 + $0x4] sm:$0xf]
  %v1018 = vld [vmem:[%s8 + $0x8] sm:$0xf]
  %v1019 = vld [vmem:[%s8 + $0xc] sm:$0xf]
  %v1020 = vpack.c.bf16 %v976, %v975
  %v1021 = vpack.c.bf16 %v978, %v977
  %v1022 = vpack.c.bf16 %v980, %v979
  %v1023 = vpack.c.bf16 %v982, %v981
  %s1024 = scalar_lea.vmem %s8, 16
  %v1025 = vld [vmem:[%s1024] sm:$0xf]
  %v1026 = vld [vmem:[%s1024 + $0x4] sm:$0xf]
  %v1027 = vld [vmem:[%s1024 + $0x8] sm:$0xf]
  %v1028 = vld [vmem:[%s1024 + $0xc] sm:$0xf]
  %v1029 = vpack.c.bf16 %v741, %v740
  %v1030 = vpack.c.bf16 %v743, %v742
  %v1031 = vpack.c.bf16 %v745, %v744
  %v1032 = vpack.c.bf16 %v747, %v746
  %v1037 = vunpack.c.l.b16 %v1025
  %v1038 = vunpack.c.l.b16 %v1026
  %v1039 = vunpack.c.l.b16 %v1027
  %v1040 = vunpack.c.l.b16 %v1028
  %v1041 = vpack.c.b16 %v1038, %v1037
  %v1042 = vpack.c.b16 %v1040, %v1039
  %vm1045 = vcmask 261120
  %v1047 = vsel %vm1045, %v1029, 0
  %v1050 = vsel %vm1045, %v1030, 0
  %v1053 = vsel %vm1045, %v1031, 0
  %v1056 = vsel %vm1045, %v1032, 0
  %1058 = vmatpush.bf16.msra.mxu0 0
  %1059 = vmatpush.bf16.msra.mxu0 0
  %1060 = vmatpush.bf16.msra.mxu0 0
  %1061 = vmatpush.bf16.msra.mxu0 0
  %1062 = vmatpush.bf16.msra.mxu0 0
  %1063 = vmatpush.bf16.msra.mxu0 0
  %1064 = vmatpush.bf16.msra.mxu0 %v1042
  %1065 = vmatpush.bf16.msra.mxu0 %v1041
  %1066 = vmatmul.bf16.gmra.mxu0 %v1047
  %v1067 = vpop.f32.mrf.mxu0
  %v1068 = vadd.f32 0.0, %v1067
  %v1069 = vpop.f32.mrf.mxu0
  %v1070 = vadd.f32 0.0, %v1069
  %1071 = vmatmul.bf16.gmra.mxu0 %v1050
  %v1072 = vpop.f32.mrf.mxu0
  %v1073 = vadd.f32 0.0, %v1072
  %v1074 = vpop.f32.mrf.mxu0
  %v1075 = vadd.f32 0.0, %v1074
  %1076 = vmatmul.bf16.gmra.mxu0 %v1053
  %v1077 = vpop.f32.mrf.mxu0
  %v1078 = vadd.f32 0.0, %v1077
  %v1079 = vpop.f32.mrf.mxu0
  %v1080 = vadd.f32 0.0, %v1079
  %1081 = vmatmul.bf16.gmra.mxu0 %v1056
  %v1082 = vpop.f32.mrf.mxu0
  %v1083 = vadd.f32 0.0, %v1082
  %v1084 = vpop.f32.mrf.mxu0
  %v1085 = vadd.f32 0.0, %v1084
  %1086 = vdwg.mxu0
  %v1091 = vunpack.c.l.b16 %v1016
  %v1092 = vunpack.c.l.b16 %v1017
  %v1093 = vunpack.c.l.b16 %v1018
  %v1094 = vunpack.c.l.b16 %v1019
  %v1095 = vpack.c.b16 %v1092, %v1091
  %v1096 = vpack.c.b16 %v1094, %v1093
  %v1100 = vsel %vm1045, %v1020, 0
  %v1103 = vsel %vm1045, %v1021, 0
  %v1106 = vsel %vm1045, %v1022, 0
  %v1109 = vsel %vm1045, %v1023, 0
  %1111 = vmatpush.bf16.msra.mxu0 0
  %1112 = vmatpush.bf16.msra.mxu0 0
  %1113 = vmatpush.bf16.msra.mxu0 0
  %1114 = vmatpush.bf16.msra.mxu0 0
  %1115 = vmatpush.bf16.msra.mxu0 0
  %1116 = vmatpush.bf16.msra.mxu0 0
  %1117 = vmatpush.bf16.msra.mxu0 %v1096
  %1118 = vmatpush.bf16.msra.mxu0 %v1095
  %1119 = vmatmul.bf16.gmra.mxu0 %v1100
  %v1120 = vpop.f32.mrf.mxu0
  %v1121 = vadd.f32 %v1068, %v1120
  %v1122 = vpop.f32.mrf.mxu0
  %v1123 = vadd.f32 %v1070, %v1122
  %1124 = vmatmul.bf16.gmra.mxu0 %v1103
  %v1125 = vpop.f32.mrf.mxu0
  %v1126 = vadd.f32 %v1073, %v1125
  %v1127 = vpop.f32.mrf.mxu0
  %v1128 = vadd.f32 %v1075, %v1127
  %1129 = vmatmul.bf16.gmra.mxu0 %v1106
  %v1130 = vpop.f32.mrf.mxu0
  %v1131 = vadd.f32 %v1078, %v1130
  %v1132 = vpop.f32.mrf.mxu0
  %v1133 = vadd.f32 %v1080, %v1132
  %1134 = vmatmul.bf16.gmra.mxu0 %v1109
  %v1135 = vpop.f32.mrf.mxu0
  %v1136 = vadd.f32 %v1083, %v1135
  %v1137 = vpop.f32.mrf.mxu0
  %v1138 = vadd.f32 %v1085, %v1137
  %1139 = vdwg.mxu0
  %s1140 = scalar_lea.vmem %s8, 32
  %v1141 = vld [vmem:[%s1140] sm:$0xf]
  %v1142 = vld [vmem:[%s1140 + $0x4] sm:$0xf]
  %v1143 = vld [vmem:[%s1140 + $0x8] sm:$0xf]
  %v1144 = vld [vmem:[%s1140 + $0xc] sm:$0xf]
  %v1145 = vpack.c.bf16 %v1009, %v1008
  %v1146 = vpack.c.bf16 %v1011, %v1010
  %v1147 = vpack.c.bf16 %v1013, %v1012
  %v1148 = vpack.c.bf16 %v1015, %v1014
  %v1153 = vunpack.c.l.b16 %v1141
  %v1154 = vunpack.c.l.b16 %v1142
  %v1155 = vunpack.c.l.b16 %v1143
  %v1156 = vunpack.c.l.b16 %v1144
  %v1157 = vpack.c.b16 %v1154, %v1153
  %v1158 = vpack.c.b16 %v1156, %v1155
  %v1162 = vsel %vm1045, %v1145, 0
  %v1165 = vsel %vm1045, %v1146, 0
  %v1168 = vsel %vm1045, %v1147, 0
  %v1171 = vsel %vm1045, %v1148, 0
  %1173 = vmatpush.bf16.msra.mxu0 0
  %1174 = vmatpush.bf16.msra.mxu0 0
  %1175 = vmatpush.bf16.msra.mxu0 0
  %1176 = vmatpush.bf16.msra.mxu0 0
  %1177 = vmatpush.bf16.msra.mxu0 0
  %1178 = vmatpush.bf16.msra.mxu0 0
  %1179 = vmatpush.bf16.msra.mxu0 %v1158
  %1180 = vmatpush.bf16.msra.mxu0 %v1157
  %1181 = vmatmul.bf16.gmra.mxu0 %v1162
  %v1182 = vpop.f32.mrf.mxu0
  %v1183 = vadd.f32 0.0, %v1182
  %v1184 = vpop.f32.mrf.mxu0
  %v1185 = vadd.f32 0.0, %v1184
  %1186 = vmatmul.bf16.gmra.mxu0 %v1165
  %v1187 = vpop.f32.mrf.mxu0
  %v1188 = vadd.f32 0.0, %v1187
  %v1189 = vpop.f32.mrf.mxu0
  %v1190 = vadd.f32 0.0, %v1189
  %1191 = vmatmul.bf16.gmra.mxu0 %v1168
  %v1192 = vpop.f32.mrf.mxu0
  %v1193 = vadd.f32 0.0, %v1192
  %v1194 = vpop.f32.mrf.mxu0
  %v1195 = vadd.f32 0.0, %v1194
  %1196 = vmatmul.bf16.gmra.mxu0 %v1171
  %v1197 = vpop.f32.mrf.mxu0
  %v1198 = vadd.f32 0.0, %v1197
  %v1199 = vpop.f32.mrf.mxu0
  %v1200 = vadd.f32 0.0, %v1199
  %1201 = vdwg.mxu0
  %v1202 = vadd.f32 %v1121, %v1183
  %v1203 = vadd.f32 %v1123, %v1185
  %v1204 = vadd.f32 %v1126, %v1188
  %v1205 = vadd.f32 %v1128, %v1190
  %v1206 = vadd.f32 %v1131, %v1193
  %v1207 = vadd.f32 %v1133, %v1195
  %v1208 = vadd.f32 %v1136, %v1198
  %v1209 = vadd.f32 %v1138, %v1200
  %v1210 = vadd.f32 %v1202, %v934
  %v1211 = vadd.f32 %v1203, %v935
  %v1212 = vadd.f32 %v1204, %v936
  %v1213 = vadd.f32 %v1205, %v937
  %v1214 = vadd.f32 %v1206, %v938
  %v1215 = vadd.f32 %v1207, %v939
  %v1216 = vadd.f32 %v1208, %v940
  %v1217 = vadd.f32 %v1209, %v941
  %v1218 = vld [vmem:[%s10] sm:$0x1]
  %v1220 = vperm.slane %v1218, 0
  %v1222 = vadd.f32 %v1210, %v1220
  %v1223 = vadd.f32 %v1211, %v1220
  %v1224 = vadd.f32 %v1212, %v1220
  %v1225 = vadd.f32 %v1213, %v1220
  %v1226 = vadd.f32 %v1214, %v1220
  %v1227 = vadd.f32 %v1215, %v1220
  %v1228 = vadd.f32 %v1216, %v1220
  %v1229 = vadd.f32 %v1217, %v1220
  %vm1230 = vcmp.gt.f32.partialorder %v1222, 0.0
  %vm1231 = vcmp.gt.f32.partialorder %v1223, 0.0
  %vm1232 = vcmp.gt.f32.partialorder %v1224, 0.0
  %vm1233 = vcmp.gt.f32.partialorder %v1225, 0.0
  %vm1234 = vcmp.gt.f32.partialorder %v1226, 0.0
  %vm1235 = vcmp.gt.f32.partialorder %v1227, 0.0
  %vm1236 = vcmp.gt.f32.partialorder %v1228, 0.0
  %vm1237 = vcmp.gt.f32.partialorder %v1229, 0.0
  %v1238 = vmul.f32 %v1222, 0.2
  %v1239 = vmul.f32 %v1223, 0.2
  %v1240 = vmul.f32 %v1224, 0.2
  %v1241 = vmul.f32 %v1225, 0.2
  %v1242 = vmul.f32 %v1226, 0.2
  %v1243 = vmul.f32 %v1227, 0.2
  %v1244 = vmul.f32 %v1228, 0.2
  %v1245 = vmul.f32 %v1229, 0.2
  %v1246 = vsel %vm1230, %v1222, %v1238
  %v1247 = vsel %vm1231, %v1223, %v1239
  %v1248 = vsel %vm1232, %v1224, %v1240
  %v1249 = vsel %vm1233, %v1225, %v1241
  %v1250 = vsel %vm1234, %v1226, %v1242
  %v1251 = vsel %vm1235, %v1227, %v1243
  %v1252 = vsel %vm1236, %v1228, %v1244
  %v1253 = vsel %vm1237, %v1229, %v1245
  %v1255 = vrot.slane %v1253, 7
  %v1264 = vrot.slane %v1246, 7
  %v1265 = vrot.slane %v1247, 7
  %v1266 = vsel %vm79, %v1264, %v1265
  %v1267 = vrot.slane %v1248, 7
  %v1268 = vsel %vm79, %v1265, %v1267
  %v1269 = vrot.slane %v1249, 7
  %v1270 = vsel %vm79, %v1267, %v1269
  %v1271 = vrot.slane %v1250, 7
  %v1272 = vsel %vm79, %v1269, %v1271
  %v1273 = vrot.slane %v1251, 7
  %v1274 = vsel %vm79, %v1271, %v1273
  %v1275 = vrot.slane %v1252, 7
  %v1276 = vsel %vm79, %v1273, %v1275
  %v1277 = vsel %vm79, %v1275, %v1255
  %v1286 = vsel %vm79, %v1255, %v1264
  %v1287 = vmul.f32 %v1286, %v106
  %v1288 = vmul.f32 %v1266, %v111
  %v1289 = vmul.f32 %v1268, %v116
  %v1290 = vmul.f32 %v1270, %v121
  %v1291 = vmul.f32 %v1272, %v126
  %v1292 = vmul.f32 %v1274, %v131
  %v1293 = vmul.f32 %v1276, %v136
  %v1294 = vmul.f32 %v1277, %v141
  %v1295 = vrot.slane %v1246, 1
  %v1296 = vrot.slane %v1247, 1
  %v1297 = vsel %vm151, %v1295, %v1296
  %v1298 = vrot.slane %v1248, 1
  %v1299 = vsel %vm151, %v1296, %v1298
  %v1300 = vrot.slane %v1249, 1
  %v1301 = vsel %vm151, %v1298, %v1300
  %v1302 = vrot.slane %v1250, 1
  %v1303 = vsel %vm151, %v1300, %v1302
  %v1304 = vrot.slane %v1251, 1
  %v1305 = vsel %vm151, %v1302, %v1304
  %v1306 = vrot.slane %v1252, 1
  %v1307 = vsel %vm151, %v1304, %v1306
  %v1308 = vrot.slane %v1253, 1
  %v1309 = vsel %vm151, %v1306, %v1308
  %v1319 = vsel %vm151, %v1308, %v1295
  %v1320 = vmul.f32 %v1297, %v180
  %v1321 = vmul.f32 %v1299, %v185
  %v1322 = vmul.f32 %v1301, %v190
  %v1323 = vmul.f32 %v1303, %v195
  %v1324 = vmul.f32 %v1305, %v200
  %v1325 = vmul.f32 %v1307, %v205
  %v1326 = vmul.f32 %v1309, %v210
  %v1327 = vmul.f32 %v1319, %v215
  %v1328 = vld [vmem:[%s11] sm:$0xf]
  %v1329 = vld [vmem:[%s11 + $0x4] sm:$0xf]
  %v1330 = vld [vmem:[%s11 + $0x8] sm:$0xf]
  %v1331 = vld [vmem:[%s11 + $0xc] sm:$0xf]
  %v1332 = vld [vmem:[%s11 + $0x10] sm:$0xf]
  %v1333 = vld [vmem:[%s11 + $0x14] sm:$0xf]
  %v1334 = vld [vmem:[%s11 + $0x18] sm:$0xf]
  %v1335 = vld [vmem:[%s11 + $0x1c] sm:$0xf]
  %v1336 = vpack.c.bf16 %v1288, %v1287
  %v1337 = vpack.c.bf16 %v1290, %v1289
  %v1338 = vpack.c.bf16 %v1292, %v1291
  %v1339 = vpack.c.bf16 %v1294, %v1293
  %s1340 = scalar_lea.vmem %s11, 32
  %v1341 = vld [vmem:[%s1340] sm:$0xf]
  %v1342 = vld [vmem:[%s1340 + $0x4] sm:$0xf]
  %v1343 = vld [vmem:[%s1340 + $0x8] sm:$0xf]
  %v1344 = vld [vmem:[%s1340 + $0xc] sm:$0xf]
  %v1345 = vld [vmem:[%s1340 + $0x10] sm:$0xf]
  %v1346 = vld [vmem:[%s1340 + $0x14] sm:$0xf]
  %v1347 = vld [vmem:[%s1340 + $0x18] sm:$0xf]
  %v1348 = vld [vmem:[%s1340 + $0x1c] sm:$0xf]
  %v1349 = vpack.c.bf16 %v1247, %v1246
  %v1350 = vpack.c.bf16 %v1249, %v1248
  %v1351 = vpack.c.bf16 %v1251, %v1250
  %v1352 = vpack.c.bf16 %v1253, %v1252
  %v1361 = vunpack.c.l.b16 %v1341
  %v1362 = vunpack.c.l.b16 %v1342
  %v1363 = vunpack.c.l.b16 %v1343
  %v1364 = vunpack.c.l.b16 %v1344
  %v1365 = vunpack.c.l.b16 %v1345
  %v1366 = vunpack.c.l.b16 %v1346
  %v1367 = vunpack.c.l.b16 %v1347
  %v1368 = vunpack.c.l.b16 %v1348
  %v1369 = vpack.c.b16 %v1362, %v1361
  %v1370 = vpack.c.b16 %v1364, %v1363
  %v1371 = vpack.c.b16 %v1366, %v1365
  %v1372 = vpack.c.b16 %v1368, %v1367
  %v1378 = vsel %vm543, %v1349, 0
  %v1381 = vsel %vm543, %v1350, 0
  %v1384 = vsel %vm543, %v1351, 0
  %v1387 = vsel %vm543, %v1352, 0
  %1389 = vmatpush.bf16.msra.mxu0 0
  %1390 = vmatpush.bf16.msra.mxu0 0
  %1391 = vmatpush.bf16.msra.mxu0 0
  %1392 = vmatpush.bf16.msra.mxu0 0
  %1393 = vmatpush.bf16.msra.mxu0 %v1372
  %1394 = vmatpush.bf16.msra.mxu0 %v1371
  %1395 = vmatpush.bf16.msra.mxu0 %v1370
  %1396 = vmatpush.bf16.msra.mxu0 %v1369
  %1397 = vmatmul.bf16.gmra.mxu0 %v1378
  %v1398 = vpop.f32.mrf.mxu0
  %v1399 = vadd.f32 0.0, %v1398
  %v1400 = vpop.f32.mrf.mxu0
  %v1401 = vadd.f32 0.0, %v1400
  %1402 = vmatmul.bf16.gmra.mxu0 %v1381
  %v1403 = vpop.f32.mrf.mxu0
  %v1404 = vadd.f32 0.0, %v1403
  %v1405 = vpop.f32.mrf.mxu0
  %v1406 = vadd.f32 0.0, %v1405
  %1407 = vmatmul.bf16.gmra.mxu0 %v1384
  %v1408 = vpop.f32.mrf.mxu0
  %v1409 = vadd.f32 0.0, %v1408
  %v1410 = vpop.f32.mrf.mxu0
  %v1411 = vadd.f32 0.0, %v1410
  %1412 = vmatmul.bf16.gmra.mxu0 %v1387
  %v1413 = vpop.f32.mrf.mxu0
  %v1414 = vadd.f32 0.0, %v1413
  %v1415 = vpop.f32.mrf.mxu0
  %v1416 = vadd.f32 0.0, %v1415
  %1417 = vdwg.mxu0
  %v1426 = vunpack.c.l.b16 %v1328
  %v1427 = vunpack.c.l.b16 %v1329
  %v1428 = vunpack.c.l.b16 %v1330
  %v1429 = vunpack.c.l.b16 %v1331
  %v1430 = vunpack.c.l.b16 %v1332
  %v1431 = vunpack.c.l.b16 %v1333
  %v1432 = vunpack.c.l.b16 %v1334
  %v1433 = vunpack.c.l.b16 %v1335
  %v1434 = vpack.c.b16 %v1427, %v1426
  %v1435 = vpack.c.b16 %v1429, %v1428
  %v1436 = vpack.c.b16 %v1431, %v1430
  %v1437 = vpack.c.b16 %v1433, %v1432
  %v1443 = vsel %vm543, %v1336, 0
  %v1446 = vsel %vm543, %v1337, 0
  %v1449 = vsel %vm543, %v1338, 0
  %v1452 = vsel %vm543, %v1339, 0
  %1454 = vmatpush.bf16.msra.mxu0 0
  %1455 = vmatpush.bf16.msra.mxu0 0
  %1456 = vmatpush.bf16.msra.mxu0 0
  %1457 = vmatpush.bf16.msra.mxu0 0
  %1458 = vmatpush.bf16.msra.mxu0 %v1437
  %1459 = vmatpush.bf16.msra.mxu0 %v1436
  %1460 = vmatpush.bf16.msra.mxu0 %v1435
  %1461 = vmatpush.bf16.msra.mxu0 %v1434
  %1462 = vmatmul.bf16.gmra.mxu0 %v1443
  %v1463 = vpop.f32.mrf.mxu0
  %v1464 = vadd.f32 %v1399, %v1463
  %v1465 = vpop.f32.mrf.mxu0
  %v1466 = vadd.f32 %v1401, %v1465
  %1467 = vmatmul.bf16.gmra.mxu0 %v1446
  %v1468 = vpop.f32.mrf.mxu0
  %v1469 = vadd.f32 %v1404, %v1468
  %v1470 = vpop.f32.mrf.mxu0
  %v1471 = vadd.f32 %v1406, %v1470
  %1472 = vmatmul.bf16.gmra.mxu0 %v1449
  %v1473 = vpop.f32.mrf.mxu0
  %v1474 = vadd.f32 %v1409, %v1473
  %v1475 = vpop.f32.mrf.mxu0
  %v1476 = vadd.f32 %v1411, %v1475
  %1477 = vmatmul.bf16.gmra.mxu0 %v1452
  %v1478 = vpop.f32.mrf.mxu0
  %v1479 = vadd.f32 %v1414, %v1478
  %v1480 = vpop.f32.mrf.mxu0
  %v1481 = vadd.f32 %v1416, %v1480
  %1482 = vdwg.mxu0
  %s1483 = scalar_lea.vmem %s11, 64
  %v1484 = vld [vmem:[%s1483] sm:$0xf]
  %v1485 = vld [vmem:[%s1483 + $0x4] sm:$0xf]
  %v1486 = vld [vmem:[%s1483 + $0x8] sm:$0xf]
  %v1487 = vld [vmem:[%s1483 + $0xc] sm:$0xf]
  %v1488 = vld [vmem:[%s1483 + $0x10] sm:$0xf]
  %v1489 = vld [vmem:[%s1483 + $0x14] sm:$0xf]
  %v1490 = vld [vmem:[%s1483 + $0x18] sm:$0xf]
  %v1491 = vld [vmem:[%s1483 + $0x1c] sm:$0xf]
  %v1492 = vpack.c.bf16 %v1321, %v1320
  %v1493 = vpack.c.bf16 %v1323, %v1322
  %v1494 = vpack.c.bf16 %v1325, %v1324
  %v1495 = vpack.c.bf16 %v1327, %v1326
  %v1504 = vunpack.c.l.b16 %v1484
  %v1505 = vunpack.c.l.b16 %v1485
  %v1506 = vunpack.c.l.b16 %v1486
  %v1507 = vunpack.c.l.b16 %v1487
  %v1508 = vunpack.c.l.b16 %v1488
  %v1509 = vunpack.c.l.b16 %v1489
  %v1510 = vunpack.c.l.b16 %v1490
  %v1511 = vunpack.c.l.b16 %v1491
  %v1512 = vpack.c.b16 %v1505, %v1504
  %v1513 = vpack.c.b16 %v1507, %v1506
  %v1514 = vpack.c.b16 %v1509, %v1508
  %v1515 = vpack.c.b16 %v1511, %v1510
  %v1521 = vsel %vm543, %v1492, 0
  %v1524 = vsel %vm543, %v1493, 0
  %v1527 = vsel %vm543, %v1494, 0
  %v1530 = vsel %vm543, %v1495, 0
  %1532 = vmatpush.bf16.msra.mxu0 0
  %1533 = vmatpush.bf16.msra.mxu0 0
  %1534 = vmatpush.bf16.msra.mxu0 0
  %1535 = vmatpush.bf16.msra.mxu0 0
  %1536 = vmatpush.bf16.msra.mxu0 %v1515
  %1537 = vmatpush.bf16.msra.mxu0 %v1514
  %1538 = vmatpush.bf16.msra.mxu0 %v1513
  %1539 = vmatpush.bf16.msra.mxu0 %v1512
  %1540 = vmatmul.bf16.gmra.mxu0 %v1521
  %v1541 = vpop.f32.mrf.mxu0
  %v1542 = vadd.f32 0.0, %v1541
  %v1543 = vpop.f32.mrf.mxu0
  %v1544 = vadd.f32 0.0, %v1543
  %1545 = vmatmul.bf16.gmra.mxu0 %v1524
  %v1546 = vpop.f32.mrf.mxu0
  %v1547 = vadd.f32 0.0, %v1546
  %v1548 = vpop.f32.mrf.mxu0
  %v1549 = vadd.f32 0.0, %v1548
  %1550 = vmatmul.bf16.gmra.mxu0 %v1527
  %v1551 = vpop.f32.mrf.mxu0
  %v1552 = vadd.f32 0.0, %v1551
  %v1553 = vpop.f32.mrf.mxu0
  %v1554 = vadd.f32 0.0, %v1553
  %1555 = vmatmul.bf16.gmra.mxu0 %v1530
  %v1556 = vpop.f32.mrf.mxu0
  %v1557 = vadd.f32 0.0, %v1556
  %v1558 = vpop.f32.mrf.mxu0
  %v1559 = vadd.f32 0.0, %v1558
  %1560 = vdwg.mxu0
  %v1561 = vadd.f32 %v1464, %v1542
  %v1562 = vadd.f32 %v1466, %v1544
  %v1563 = vadd.f32 %v1469, %v1547
  %v1564 = vadd.f32 %v1471, %v1549
  %v1565 = vadd.f32 %v1474, %v1552
  %v1566 = vadd.f32 %v1476, %v1554
  %v1567 = vadd.f32 %v1479, %v1557
  %v1568 = vadd.f32 %v1481, %v1559
  %v1569 = vld [vmem:[%s12] sm:$0x1]
  %v1571 = vperm.slane %v1569, 0
  %v1573 = vadd.f32 %v1561, %v1571
  %v1574 = vadd.f32 %v1562, %v1571
  %v1575 = vadd.f32 %v1563, %v1571
  %v1576 = vadd.f32 %v1564, %v1571
  %v1577 = vadd.f32 %v1565, %v1571
  %v1578 = vadd.f32 %v1566, %v1571
  %v1579 = vadd.f32 %v1567, %v1571
  %v1580 = vadd.f32 %v1568, %v1571
  %1581 = vxpose.xlu0.b32.start [1/16] %v1573, 128
  %1582 = vxpose.xlu0.b32.cont [2/16] %v1574, 128
  %1583 = vxpose.xlu0.b32.cont [3/16] %v1575, 128
  %1584 = vxpose.xlu0.b32.cont [4/16] %v1576, 128
  %1585 = vxpose.xlu0.b32.cont [5/16] %v1577, 128
  %1586 = vxpose.xlu0.b32.cont [6/16] %v1578, 128
  %1587 = vxpose.xlu0.b32.cont [7/16] %v1579, 128
  %1588 = vxpose.xlu0.b32.cont [8/16] %v1580, 128
  %1589 = vxpose.xlu0.b32.cont [9/16] 0.0, 128
  %1590 = vxpose.xlu0.b32.cont [10/16] 0.0, 128
  %1591 = vxpose.xlu0.b32.cont [11/16] 0.0, 128
  %1592 = vxpose.xlu0.b32.cont [12/16] 0.0, 128
  %1593 = vxpose.xlu0.b32.cont [13/16] 0.0, 128
  %1594 = vxpose.xlu0.b32.cont [14/16] 0.0, 128
  %1595 = vxpose.xlu0.b32.cont [15/16] 0.0, 128
  %1596 = vxpose.xlu0.b32.end [16/16] 0.0, 128
  %v1597 = vpop.trf.xlu0
  %v1598 = vpop.trf.xlu0
  %v1599 = vpop.trf.xlu0
  %v1600 = vpop.trf.xlu0
  %v1601 = vpop.trf.xlu0
  %v1602 = vpop.trf.xlu0
  %v1603 = vpop.trf.xlu0
  %v1604 = vpop.trf.xlu0
  %v1605 = vpop.trf.xlu0
  %v1606 = vpop.trf.xlu0
  %v1607 = vpop.trf.xlu0
  %v1608 = vpop.trf.xlu0
  %v1609 = vpop.trf.xlu0
  %v1610 = vpop.trf.xlu0
  %v1611 = vpop.trf.xlu0
  %v1612 = vpop.trf.xlu0
  %1613 = vst.msk [vmem:[%s13] sm:$0xff] %vm543, %v1597
  // Predicated region
  $region54: #{base_trainer_forward.3} parent=0 // pred_check
    _
  $region55: #{base_trainer_forward.3} parent=0 // pred_check_branch
    %1615 = sbr.rel (0) target = $region57
  $region56: #{base_trainer_forward.3} parent=0 // pred_region
    _
  $region57: #{base_trainer_forward.3} parent=0 // pred_fallthru
    _
  // Predicated region
  $region58: #{base_trainer_forward.3} parent=0 // pred_check
    _
  $region59: #{base_trainer_forward.3} parent=0 // pred_check_branch
    %1617 = sbr.rel (0) target = $region61
  $region60: #{base_trainer_forward.3} parent=0 // pred_region
    _
  $region61: #{base_trainer_forward.3} parent=0 // pred_fallthru
    _

</llo_original>
